<compile_context>
chip_gen: v6e
topology: v6e:2x2x1
jax: 0.10.0
libtpu: 0.0.40
codegen_flags: <defaults>
</compile_context>

<pallas_src>
import functools

import jax
import jax.numpy as jnp
from jax.experimental import pallas as pl
from jax.experimental.pallas import tpu as pltpu


# ----------------------------------------------------------------------------
# Fused DFuseBlock kernel (one batch element per grid step)
# ----------------------------------------------------------------------------
def _dfuse_kernel(x_ref, y_ref, w1_ref, w2_ref, wz_ref, wo_ref, mask_ref,
                  o_ref, xbuf_ref, ybuf_ref, *, H, W, C):
    """All intermediates stay in VMEM / registers; only z3 is stored to HBM.

    x_ref, y_ref : (1, C, Lext)    zero-framed + zero-margined inputs
    w1_ref,w2_ref: (C,   9*C + 1)  3x3 weights, bias folded as last column
    wz_ref       : (2C, 18*C + 1)  3x3 on cat(x2, y2): [x-half | y-half | bias]
    wo_ref       : (C,  2*C + 1)   1x1 weight, bias folded
    mask_ref     : (1, L)          1.0 on interior frame pixels, 0.0 on border
    o_ref        : (1, C, L)       output (full padded frame; interior valid)
    xbuf_ref/ybuf_ref : (C, Lext)  f32 VMEM scratch for the x2 / y2 frames
    """
    Hp, Wp = H + 2, W + 2
    L = Hp * Wp
    margin = Wp + 1                      # largest |tap offset| of a 3x3 conv
    cdt = w1_ref.dtype                   # MXU compute dtype (bf16 or f32)

    # Tap offsets of a 3x3 / pad-1 conv in flat padded-frame coordinates.
    offsets = [(dy - 1) * Wp + (dx - 1) for dy in range(3) for dx in range(3)]

    def taps(frame_f32):
        # frame_f32: (C, Lext) f32 -> 9 shifted (C, L) views (static lane slices,
        # all offsets < 128, never out of bounds thanks to the zero margins).
        return [frame_f32[:, margin + off: margin + off + L] for off in offsets]

    ones_row = jnp.ones((1, L), jnp.float32)        # bias row (folded bias)
    mask = mask_ref[...]                            # (1, L) f32

    def conv_relu(tap_list, w_aug_ref):
        # One MXU matmul per conv: K = 9*Cin + 1, N = L (lane-dense output).
        cols = jnp.concatenate(tap_list + [ones_row], axis=0)       # (K, L) f32
        z = jnp.dot(w_aug_ref[...], cols.astype(cdt),
                    preferred_element_type=jnp.float32)             # (Cout, L)
        return jnp.maximum(z, 0.0)

    # ---- conv311_1to1_1 / conv311_1to1_2 ------------------------------------
    x_in = x_ref[0].astype(jnp.float32)                             # (C, Lext)
    y_in = y_ref[0].astype(jnp.float32)
    x2 = conv_relu(taps(x_in), w1_ref) * mask                       # (C, L)
    y2 = conv_relu(taps(y_in), w2_ref) * mask

    # Re-frame x2 / y2 in VMEM (zero margins + zero border) for the next 3x3;
    # this replaces the host-side jnp.pad + HBM round-trip of the old version.
    xbuf_ref[...] = jnp.zeros(xbuf_ref.shape, xbuf_ref.dtype)
    ybuf_ref[...] = jnp.zeros(ybuf_ref.shape, ybuf_ref.dtype)
    xbuf_ref[:, margin:margin + L] = x2
    ybuf_ref[:, margin:margin + L] = y2

    # ---- conv311_2to1 on cat((x2, y2), dim=1) -------------------------------
    # The channel concat is folded into the weight split: wz = [wz_x | wz_y | b].
    cols_z = jnp.concatenate(
        taps(xbuf_ref[...]) + taps(ybuf_ref[...]) + [ones_row], axis=0)
    z2 = jnp.maximum(
        jnp.dot(wz_ref[...], cols_z.astype(cdt),
                preferred_element_type=jnp.float32), 0.0)           # (2C, L)

    # ---- conv101 (1x1) ------------------------------------------------------
    z2_aug = jnp.concatenate([z2, ones_row], axis=0)                # (2C+1, L)
    z3 = jnp.maximum(
        jnp.dot(wo_ref[...], z2_aug.astype(cdt),
                preferred_element_type=jnp.float32), 0.0)           # (C, L)

    # Lane-dense store: minor dim is L = Hp*Wp (>= 128 lanes, unmasked vst).
    o_ref[...] = z3[None, :, :].astype(o_ref.dtype)


# ----------------------------------------------------------------------------
# Host-side weight preparation (BN folding + bias/concat folding)
# ----------------------------------------------------------------------------
def _flatten_oihw_3x3(w_oihw):
    # (Cout, Cin, 3, 3) -> (Cout, 9*Cin), tap-major (dy, dx) then cin,
    # matching the im2col row order built inside the kernel.
    co, ci, kh, kw = w_oihw.shape
    return jnp.transpose(w_oihw, (0, 2, 3, 1)).reshape(co, kh * kw * ci)


def _prepare_fused_weights(params, channel, compute_dtype):
    C = channel
    p1, p2 = params["conv311_1to1_1"], params["conv311_1to1_2"]
    pz, po = params["conv311_2to1"], params["conv101"]
    w1_aug = jnp.concatenate([_flatten_oihw_3x3(p1["w"]), p1["b"][:, None]], axis=1)
    w2_aug = jnp.concatenate([_flatten_oihw_3x3(p2["w"]), p2["b"][:, None]], axis=1)
    wz_aug = jnp.concatenate([_flatten_oihw_3x3(pz["w"][:, :C]),   # x2 half
                              _flatten_oihw_3x3(pz["w"][:, C:]),   # y2 half
                              pz["b"][:, None]], axis=1)
    wo_aug = jnp.concatenate([po["w"][:, :, 0, 0], po["b"][:, None]], axis=1)
    cast = lambda a: a.astype(compute_dtype)
    return cast(w1_aug), cast(w2_aug), cast(wz_aug), cast(wo_aug)


# ----------------------------------------------------------------------------
# DFuseBlock forward (NCHW in / NCHW out, matching the PyTorch module)
# ----------------------------------------------------------------------------
def d_fuse_block(x1_nchw, y1_nchw, params, *, compute_dtype=jnp.bfloat16):
    N, C, H, W = x1_nchw.shape
    Hp, Wp = H + 2, W + 2
    L = Hp * Wp
    margin = Wp + 1
    Lext = L + 2 * margin

    def to_frames(x):
        # zero-pad the spatial frame, flatten it onto the lane axis and add the
        # zero lane-margins the in-kernel tap slices rely on (tiny, once per
        # block input; intermediates never leave VMEM).
        xp = jnp.pad(x, ((0, 0), (0, 0), (1, 1), (1, 1))).reshape(N, C, L)
        return jnp.pad(xp, ((0, 0), (0, 0), (margin, margin))).astype(compute_dtype)

    xe = to_frames(x1_nchw)
    ye = to_frames(y1_nchw)
    w1_aug, w2_aug, wz_aug, wo_aug = _prepare_fused_weights(params, C, compute_dtype)
    mask = jnp.pad(jnp.ones((H, W), jnp.float32), ((1, 1), (1, 1))).reshape(1, L)

    # NOTE: for large H*W this single fused kernel should additionally tile the
    # frame into halo-2 row blocks (extra "parallel" grid axis, sized against
    # v7x's 64 MiB VMEM) to get >=8 pipeline steps; at these toy sizes the whole
    # image fits comfortably per grid step.
    kern = functools.partial(_dfuse_kernel, H=H, W=W, C=C)
    out_flat = pl.pallas_call(
        kern,
        out_shape=jax.ShapeDtypeStruct((N, C, L), x1_nchw.dtype),
        grid=(N,),
        in_specs=[
            pl.BlockSpec((1, C, Lext), lambda n: (n, 0, 0)),          # x1
            pl.BlockSpec((1, C, Lext), lambda n: (n, 0, 0)),          # y1
            pl.BlockSpec((C, 9 * C + 1), lambda n: (0, 0)),           # w1 (+bias)
            pl.BlockSpec((C, 9 * C + 1), lambda n: (0, 0)),           # w2 (+bias)
            pl.BlockSpec((2 * C, 18 * C + 1), lambda n: (0, 0)),      # wz (+bias)
            pl.BlockSpec((C, 2 * C + 1), lambda n: (0, 0)),           # w101 (+bias)
            pl.BlockSpec((1, L), lambda n: (0, 0)),                   # interior mask
        ],
        out_specs=pl.BlockSpec((1, C, L), lambda n: (n, 0, 0)),
        scratch_shapes=[
            pltpu.VMEM((C, Lext), jnp.float32),   # x2 frame
            pltpu.VMEM((C, Lext), jnp.float32),   # y2 frame
        ],
        compiler_params=pltpu.CompilerParams(
            dimension_semantics=("parallel",)),
    )(xe, ye, w1_aug, w2_aug, wz_aug, wo_aug, mask)

    # (N, C, Hp*Wp) -> crop the zero-padding frame -> (N, C, H, W).  Output is
    # already NCHW: no transpose on either side of the kernel.
    return out_flat.reshape(N, C, Hp, Wp)[:, :, 1:H + 1, 1:W + 1]


# ----------------------------------------------------------------------------
# Deterministic parameter construction (Conv2d + BatchNorm2d(eval) folded)
# ----------------------------------------------------------------------------
def _make_basic_conv_params(key, cin, cout, k):
    kw_key, g_key, b_key, m_key, v_key = jax.random.split(key, 5)
    w_oihw = jax.random.normal(kw_key, (cout, cin, k, k), jnp.float32) * 0.1
    gamma = 1.0 + 0.1 * jax.random.normal(g_key, (cout,), jnp.float32)
    beta = 0.05 * jax.random.normal(b_key, (cout,), jnp.float32)
    mean = 0.05 * jax.random.normal(m_key, (cout,), jnp.float32)
    var = jnp.abs(jax.random.normal(v_key, (cout,), jnp.float32)) + 0.5
    scale = gamma / jnp.sqrt(var + 1e-5)
    return {"w": w_oihw * scale[:, None, None, None],   # BN scale folded
            "b": beta - mean * scale}                   # BN shift folded


def make_dfuse_params(channel, seed=0):
    k1, k2, k3, k4 = jax.random.split(jax.random.PRNGKey(seed), 4)
    return {
        "conv311_1to1_1": _make_basic_conv_params(k1, channel, channel, 3),
        "conv311_1to1_2": _make_basic_conv_params(k2, channel, channel, 3),
        "conv311_2to1": _make_basic_conv_params(k3, 2 * channel, 2 * channel, 3),
        "conv101": _make_basic_conv_params(k4, 2 * channel, channel, 1),
    }


# ----------------------------------------------------------------------------
# Pure-JAX reference (NCHW end-to-end) for validation
# ----------------------------------------------------------------------------
def _ref_conv_bn_relu(x_nchw, w_oihw, b, *, padding):
    y = jax.lax.conv_general_dilated(
        x_nchw, w_oihw, window_strides=(1, 1),
        padding=[(padding, padding), (padding, padding)],
        dimension_numbers=("NCHW", "OIHW", "NCHW"))
    return jnp.maximum(y + b[None, :, None, None], 0.0)


def _ref_d_fuse_block(x1, y1, params):
    p = params
    x2 = _ref_conv_bn_relu(x1, p["conv311_1to1_1"]["w"], p["conv311_1to1_1"]["b"], padding=1)
    y2 = _ref_conv_bn_relu(y1, p["conv311_1to1_2"]["w"], p["conv311_1to1_2"]["b"], padding=1)
    z1 = jnp.concatenate([x2, y2], axis=1)
    z2 = _ref_conv_bn_relu(z1, p["conv311_2to1"]["w"], p["conv311_2to1"]["b"], padding=1)
    z3 = _ref_conv_bn_relu(z2, p["conv101"]["w"], p["conv101"]["b"], padding=0)
    return z3


if __name__ == "__main__":
    N, C, H, W = 2, 4, 16, 16
    kx, ky = jax.random.split(jax.random.PRNGKey(0))
    x1 = jax.random.normal(kx, (N, C, H, W), jnp.float32)
    y1 = jax.random.normal(ky, (N, C, H, W), jnp.float32)
    params = make_dfuse_params(C, seed=0)

    ref = jax.block_until_ready(_ref_d_fuse_block(x1, y1, params))

    # f32-matmul path: structural correctness check.
    out_f32 = jax.block_until_ready(
        d_fuse_block(x1, y1, params, compute_dtype=jnp.float32))
    assert out_f32.shape == (N, C, H, W), out_f32.shape
    assert jnp.allclose(out_f32, ref, atol=2e-2, rtol=2e-2), (
        float(jnp.max(jnp.abs(out_f32 - ref))))

    # bf16-matmul / f32-accumulate path (default): looser tolerance.
    out_bf16 = jax.block_until_ready(d_fuse_block(x1, y1, params))
    assert out_bf16.shape == (N, C, H, W), out_bf16.shape
    assert jnp.allclose(out_bf16, ref, atol=5e-2, rtol=5e-2), (
        float(jnp.max(jnp.abs(out_bf16 - ref))))

    print("KERNEL_OK")
</pallas_src>

<mosaic_0001>
module attributes {stable_mosaic.version = 11 : i64} {
  func.func @_dfuse_kernel(%arg0: i32, %arg1: memref<1x4x362xf32, #tpu.memory_space<vmem>>, %arg2: memref<1x4x362xf32, #tpu.memory_space<vmem>>, %arg3: memref<4x37xf32, #tpu.memory_space<vmem>>, %arg4: memref<4x37xf32, #tpu.memory_space<vmem>>, %arg5: memref<8x73xf32, #tpu.memory_space<vmem>>, %arg6: memref<4x9xf32, #tpu.memory_space<vmem>>, %arg7: memref<1x324xf32, #tpu.memory_space<vmem>>, %arg8: memref<1x4x324xf32, #tpu.memory_space<vmem>>, %arg9: memref<4x362xf32, #tpu.memory_space<vmem>>, %arg10: memref<4x362xf32, #tpu.memory_space<vmem>>) attributes {dimension_semantics = [#tpu.dimension_semantics<parallel>], iteration_bounds = array<i64: 2>, scalar_prefetch = 0 : i64, scratch_operands = 2 : i64, tpu.core_type = #tpu.core_type<tc>, window_params = [{transform_indices = @transform_0, window_bounds = array<i64: 1, 4, 362>}, {transform_indices = @transform_1, window_bounds = array<i64: 1, 4, 362>}, {pipeline_mode = #tpu.pipeline_mode<synchronous>, transform_indices = @transform_2, window_bounds = array<i64: 4, 37>}, {pipeline_mode = #tpu.pipeline_mode<synchronous>, transform_indices = @transform_3, window_bounds = array<i64: 4, 37>}, {pipeline_mode = #tpu.pipeline_mode<synchronous>, transform_indices = @transform_4, window_bounds = array<i64: 8, 73>}, {pipeline_mode = #tpu.pipeline_mode<synchronous>, transform_indices = @transform_5, window_bounds = array<i64: 4, 9>}, {pipeline_mode = #tpu.pipeline_mode<synchronous>, transform_indices = @transform_6, window_bounds = array<i64: 1, 324>}, {transform_indices = @transform_7, window_bounds = array<i64: 1, 4, 324>}]} {
    %cst = arith.constant 1.000000e+00 : f32
    %0 = vector.broadcast %cst : f32 to vector<1x324xf32>
    %c0 = arith.constant 0 : index
    %c0_0 = arith.constant 0 : index
    %1 = vector.load %arg7[%c0, %c0_0] : memref<1x324xf32, #tpu.memory_space<vmem>>, vector<1x324xf32>
    %c0_1 = arith.constant 0 : index
    %c0_2 = arith.constant 0 : index
    %c0_3 = arith.constant 0 : index
    %2 = vector.load %arg1[%c0_1, %c0_2, %c0_3] : memref<1x4x362xf32, #tpu.memory_space<vmem>>, vector<1x4x362xf32>
    %3 = vector.shape_cast %2 : vector<1x4x362xf32> to vector<4x362xf32>
    %c0_4 = arith.constant 0 : index
    %c0_5 = arith.constant 0 : index
    %c0_6 = arith.constant 0 : index
    %4 = vector.load %arg2[%c0_4, %c0_5, %c0_6] : memref<1x4x362xf32, #tpu.memory_space<vmem>>, vector<1x4x362xf32>
    %5 = vector.shape_cast %4 : vector<1x4x362xf32> to vector<4x362xf32>
    %6 = vector.extract_strided_slice %3 {offsets = [0, 0], sizes = [4, 324], strides = [1, 1]} : vector<4x362xf32> to vector<4x324xf32>
    %7 = vector.extract_strided_slice %3 {offsets = [0, 1], sizes = [4, 324], strides = [1, 1]} : vector<4x362xf32> to vector<4x324xf32>
    %8 = vector.extract_strided_slice %3 {offsets = [0, 2], sizes = [4, 324], strides = [1, 1]} : vector<4x362xf32> to vector<4x324xf32>
    %9 = vector.extract_strided_slice %3 {offsets = [0, 18], sizes = [4, 324], strides = [1, 1]} : vector<4x362xf32> to vector<4x324xf32>
    %10 = vector.extract_strided_slice %3 {offsets = [0, 19], sizes = [4, 324], strides = [1, 1]} : vector<4x362xf32> to vector<4x324xf32>
    %11 = vector.extract_strided_slice %3 {offsets = [0, 20], sizes = [4, 324], strides = [1, 1]} : vector<4x362xf32> to vector<4x324xf32>
    %12 = vector.extract_strided_slice %3 {offsets = [0, 36], sizes = [4, 324], strides = [1, 1]} : vector<4x362xf32> to vector<4x324xf32>
    %13 = vector.extract_strided_slice %3 {offsets = [0, 37], sizes = [4, 324], strides = [1, 1]} : vector<4x362xf32> to vector<4x324xf32>
    %14 = vector.extract_strided_slice %3 {offsets = [0, 38], sizes = [4, 324], strides = [1, 1]} : vector<4x362xf32> to vector<4x324xf32>
    %15 = tpu.concatenate %6, %7, %8, %9, %10, %11, %12, %13, %14, %0 in 0 : vector<4x324xf32>, vector<4x324xf32>, vector<4x324xf32>, vector<4x324xf32>, vector<4x324xf32>, vector<4x324xf32>, vector<4x324xf32>, vector<4x324xf32>, vector<4x324xf32>, vector<1x324xf32> -> vector<37x324xf32>
    %c0_7 = arith.constant 0 : index
    %c0_8 = arith.constant 0 : index
    %16 = vector.load %arg3[%c0_7, %c0_8] : memref<4x37xf32, #tpu.memory_space<vmem>>, vector<4x37xf32>
    %cst_9 = arith.constant dense<0.000000e+00> : vector<4x324xf32>
    %17 = tpu.matmul %16, %15, %cst_9 {dimension_numbers = #tpu.dot_dimension_numbers<[1], [0], [0], [1], [0, 0, 1, 1], [], []>} : vector<4x37xf32>, vector<37x324xf32>, vector<4x324xf32> -> vector<4x324xf32>
    %cst_10 = arith.constant 0.000000e+00 : f32
    %18 = vector.broadcast %cst_10 : f32 to vector<4x324xf32>
    %19 = arith.maximumf %17, %18 : vector<4x324xf32>
    %20 = vector.broadcast %1 : vector<1x324xf32> to vector<4x324xf32>
    %21 = arith.mulf %19, %20 : vector<4x324xf32>
    %22 = vector.extract_strided_slice %5 {offsets = [0, 0], sizes = [4, 324], strides = [1, 1]} : vector<4x362xf32> to vector<4x324xf32>
    %23 = vector.extract_strided_slice %5 {offsets = [0, 1], sizes = [4, 324], strides = [1, 1]} : vector<4x362xf32> to vector<4x324xf32>
    %24 = vector.extract_strided_slice %5 {offsets = [0, 2], sizes = [4, 324], strides = [1, 1]} : vector<4x362xf32> to vector<4x324xf32>
    %25 = vector.extract_strided_slice %5 {offsets = [0, 18], sizes = [4, 324], strides = [1, 1]} : vector<4x362xf32> to vector<4x324xf32>
    %26 = vector.extract_strided_slice %5 {offsets = [0, 19], sizes = [4, 324], strides = [1, 1]} : vector<4x362xf32> to vector<4x324xf32>
    %27 = vector.extract_strided_slice %5 {offsets = [0, 20], sizes = [4, 324], strides = [1, 1]} : vector<4x362xf32> to vector<4x324xf32>
    %28 = vector.extract_strided_slice %5 {offsets = [0, 36], sizes = [4, 324], strides = [1, 1]} : vector<4x362xf32> to vector<4x324xf32>
    %29 = vector.extract_strided_slice %5 {offsets = [0, 37], sizes = [4, 324], strides = [1, 1]} : vector<4x362xf32> to vector<4x324xf32>
    %30 = vector.extract_strided_slice %5 {offsets = [0, 38], sizes = [4, 324], strides = [1, 1]} : vector<4x362xf32> to vector<4x324xf32>
    %31 = tpu.concatenate %22, %23, %24, %25, %26, %27, %28, %29, %30, %0 in 0 : vector<4x324xf32>, vector<4x324xf32>, vector<4x324xf32>, vector<4x324xf32>, vector<4x324xf32>, vector<4x324xf32>, vector<4x324xf32>, vector<4x324xf32>, vector<4x324xf32>, vector<1x324xf32> -> vector<37x324xf32>
    %c0_11 = arith.constant 0 : index
    %c0_12 = arith.constant 0 : index
    %32 = vector.load %arg4[%c0_11, %c0_12] : memref<4x37xf32, #tpu.memory_space<vmem>>, vector<4x37xf32>
    %cst_13 = arith.constant dense<0.000000e+00> : vector<4x324xf32>
    %33 = tpu.matmul %32, %31, %cst_13 {dimension_numbers = #tpu.dot_dimension_numbers<[1], [0], [0], [1], [0, 0, 1, 1], [], []>} : vector<4x37xf32>, vector<37x324xf32>, vector<4x324xf32> -> vector<4x324xf32>
    %cst_14 = arith.constant 0.000000e+00 : f32
    %34 = vector.broadcast %cst_14 : f32 to vector<4x324xf32>
    %35 = arith.maximumf %33, %34 : vector<4x324xf32>
    %36 = vector.broadcast %1 : vector<1x324xf32> to vector<4x324xf32>
    %37 = arith.mulf %35, %36 : vector<4x324xf32>
    %cst_15 = arith.constant 0.000000e+00 : f32
    %38 = vector.broadcast %cst_15 : f32 to vector<4x362xf32>
    %c0_16 = arith.constant 0 : index
    %c0_17 = arith.constant 0 : index
    %39 = vector.load %arg9[%c0_16, %c0_17] : memref<4x362xf32, #tpu.memory_space<vmem>>, vector<4x362xf32>
    tpu.vector_store %arg9[%c0_16, %c0_17], %38 {strides = array<i32>} : memref<4x362xf32, #tpu.memory_space<vmem>>, vector<4x362xf32>,
    %cst_18 = arith.constant 0.000000e+00 : f32
    %40 = vector.broadcast %cst_18 : f32 to vector<4x362xf32>
    %c0_19 = arith.constant 0 : index
    %c0_20 = arith.constant 0 : index
    %41 = vector.load %arg10[%c0_19, %c0_20] : memref<4x362xf32, #tpu.memory_space<vmem>>, vector<4x362xf32>
    tpu.vector_store %arg10[%c0_19, %c0_20], %40 {strides = array<i32>} : memref<4x362xf32, #tpu.memory_space<vmem>>, vector<4x362xf32>,
    %c0_21 = arith.constant 0 : index
    %c19 = arith.constant 19 : index
    %42 = vector.load %arg9[%c0_21, %c19] : memref<4x362xf32, #tpu.memory_space<vmem>>, vector<4x324xf32>
    tpu.vector_store %arg9[%c0_21, %c19], %21 {strides = array<i32>} : memref<4x362xf32, #tpu.memory_space<vmem>>, vector<4x324xf32>,
    %c0_22 = arith.constant 0 : index
    %c19_23 = arith.constant 19 : index
    %43 = vector.load %arg10[%c0_22, %c19_23] : memref<4x362xf32, #tpu.memory_space<vmem>>, vector<4x324xf32>
    tpu.vector_store %arg10[%c0_22, %c19_23], %37 {strides = array<i32>} : memref<4x362xf32, #tpu.memory_space<vmem>>, vector<4x324xf32>,
    %c0_24 = arith.constant 0 : index
    %c0_25 = arith.constant 0 : index
    %44 = vector.load %arg9[%c0_24, %c0_25] : memref<4x362xf32, #tpu.memory_space<vmem>>, vector<4x362xf32>
    %45 = vector.extract_strided_slice %44 {offsets = [0, 0], sizes = [4, 324], strides = [1, 1]} : vector<4x362xf32> to vector<4x324xf32>
    %46 = vector.extract_strided_slice %44 {offsets = [0, 1], sizes = [4, 324], strides = [1, 1]} : vector<4x362xf32> to vector<4x324xf32>
    %47 = vector.extract_strided_slice %44 {offsets = [0, 2], sizes = [4, 324], strides = [1, 1]} : vector<4x362xf32> to vector<4x324xf32>
    %48 = vector.extract_strided_slice %44 {offsets = [0, 18], sizes = [4, 324], strides = [1, 1]} : vector<4x362xf32> to vector<4x324xf32>
    %49 = vector.extract_strided_slice %44 {offsets = [0, 19], sizes = [4, 324], strides = [1, 1]} : vector<4x362xf32> to vector<4x324xf32>
    %50 = vector.extract_strided_slice %44 {offsets = [0, 20], sizes = [4, 324], strides = [1, 1]} : vector<4x362xf32> to vector<4x324xf32>
    %51 = vector.extract_strided_slice %44 {offsets = [0, 36], sizes = [4, 324], strides = [1, 1]} : vector<4x362xf32> to vector<4x324xf32>
    %52 = vector.extract_strided_slice %44 {offsets = [0, 37], sizes = [4, 324], strides = [1, 1]} : vector<4x362xf32> to vector<4x324xf32>
    %53 = vector.extract_strided_slice %44 {offsets = [0, 38], sizes = [4, 324], strides = [1, 1]} : vector<4x362xf32> to vector<4x324xf32>
    %c0_26 = arith.constant 0 : index
    %c0_27 = arith.constant 0 : index
    %54 = vector.load %arg10[%c0_26, %c0_27] : memref<4x362xf32, #tpu.memory_space<vmem>>, vector<4x362xf32>
    %55 = vector.extract_strided_slice %54 {offsets = [0, 0], sizes = [4, 324], strides = [1, 1]} : vector<4x362xf32> to vector<4x324xf32>
    %56 = vector.extract_strided_slice %54 {offsets = [0, 1], sizes = [4, 324], strides = [1, 1]} : vector<4x362xf32> to vector<4x324xf32>
    %57 = vector.extract_strided_slice %54 {offsets = [0, 2], sizes = [4, 324], strides = [1, 1]} : vector<4x362xf32> to vector<4x324xf32>
    %58 = vector.extract_strided_slice %54 {offsets = [0, 18], sizes = [4, 324], strides = [1, 1]} : vector<4x362xf32> to vector<4x324xf32>
    %59 = vector.extract_strided_slice %54 {offsets = [0, 19], sizes = [4, 324], strides = [1, 1]} : vector<4x362xf32> to vector<4x324xf32>
    %60 = vector.extract_strided_slice %54 {offsets = [0, 20], sizes = [4, 324], strides = [1, 1]} : vector<4x362xf32> to vector<4x324xf32>
    %61 = vector.extract_strided_slice %54 {offsets = [0, 36], sizes = [4, 324], strides = [1, 1]} : vector<4x362xf32> to vector<4x324xf32>
    %62 = vector.extract_strided_slice %54 {offsets = [0, 37], sizes = [4, 324], strides = [1, 1]} : vector<4x362xf32> to vector<4x324xf32>
    %63 = vector.extract_strided_slice %54 {offsets = [0, 38], sizes = [4, 324], strides = [1, 1]} : vector<4x362xf32> to vector<4x324xf32>
    %64 = tpu.concatenate %45, %46, %47, %48, %49, %50, %51, %52, %53, %55, %56, %57, %58, %59, %60, %61 in 0 : vector<4x324xf32>, vector<4x324xf32>, vector<4x324xf32>, vector<4x324xf32>, vector<4x324xf32>, vector<4x324xf32>, vector<4x324xf32>, vector<4x324xf32>, vector<4x324xf32>, vector<4x324xf32>, vector<4x324xf32>, vector<4x324xf32>, vector<4x324xf32>, vector<4x324xf32>, vector<4x324xf32>, vector<4x324xf32> -> vector<64x324xf32>
    %65 = tpu.concatenate %62, %63, %0 in 0 : vector<4x324xf32>, vector<4x324xf32>, vector<1x324xf32> -> vector<9x324xf32>
    %66 = tpu.concatenate %64, %65 in 0 : vector<64x324xf32>, vector<9x324xf32> -> vector<73x324xf32>
    %c0_28 = arith.constant 0 : index
    %c0_29 = arith.constant 0 : index
    %67 = vector.load %arg5[%c0_28, %c0_29] : memref<8x73xf32, #tpu.memory_space<vmem>>, vector<8x73xf32>
    %cst_30 = arith.constant dense<0.000000e+00> : vector<8x324xf32>
    %68 = tpu.matmul %67, %66, %cst_30 {dimension_numbers = #tpu.dot_dimension_numbers<[1], [0], [0], [1], [0, 0, 1, 1], [], []>} : vector<8x73xf32>, vector<73x324xf32>, vector<8x324xf32> -> vector<8x324xf32>
    %cst_31 = arith.constant 0.000000e+00 : f32
    %69 = vector.broadcast %cst_31 : f32 to vector<8x324xf32>
    %70 = arith.maximumf %68, %69 : vector<8x324xf32>
    %71 = tpu.concatenate %70, %0 in 0 : vector<8x324xf32>, vector<1x324xf32> -> vector<9x324xf32>
    %c0_32 = arith.constant 0 : index
    %c0_33 = arith.constant 0 : index
    %72 = vector.load %arg6[%c0_32, %c0_33] : memref<4x9xf32, #tpu.memory_space<vmem>>, vector<4x9xf32>
    %cst_34 = arith.constant dense<0.000000e+00> : vector<4x324xf32>
    %73 = tpu.matmul %72, %71, %cst_34 {dimension_numbers = #tpu.dot_dimension_numbers<[1], [0], [0], [1], [0, 0, 1, 1], [], []>} : vector<4x9xf32>, vector<9x324xf32>, vector<4x324xf32> -> vector<4x324xf32>
    %cst_35 = arith.constant 0.000000e+00 : f32
    %74 = vector.broadcast %cst_35 : f32 to vector<4x324xf32>
    %75 = arith.maximumf %73, %74 : vector<4x324xf32>
    %76 = vector.shape_cast %75 : vector<4x324xf32> to vector<1x4x324xf32>
    %c0_36 = arith.constant 0 : index
    %c0_37 = arith.constant 0 : index
    %c0_38 = arith.constant 0 : index
    %77 = vector.load %arg8[%c0_36, %c0_37, %c0_38] : memref<1x4x324xf32, #tpu.memory_space<vmem>>, vector<1x4x324xf32>
    tpu.vector_store %arg8[%c0_36, %c0_37, %c0_38], %76 {strides = array<i32>} : memref<1x4x324xf32, #tpu.memory_space<vmem>>, vector<1x4x324xf32>,
    return
  }
  func.func @transform_0(%arg0: i32) -> (i32, i32, i32) {
    %c0_i32 = arith.constant 0 : i32
    %c0_i32_0 = arith.constant 0 : i32
    %c0_i32_1 = arith.constant 0 : i32
    return %arg0, %c0_i32, %c0_i32_0 : i32, i32, i32
  }
  func.func @transform_1(%arg0: i32) -> (i32, i32, i32) {
    %c0_i32 = arith.constant 0 : i32
    %c0_i32_0 = arith.constant 0 : i32
    %c0_i32_1 = arith.constant 0 : i32
    return %arg0, %c0_i32, %c0_i32_0 : i32, i32, i32
  }
  func.func @transform_2(%arg0: i32) -> (i32, i32) {
    %c0_i32 = arith.constant 0 : i32
    %c0_i32_0 = arith.constant 0 : i32
    %c0_i32_1 = arith.constant 0 : i32
    return %c0_i32, %c0_i32_0 : i32, i32
  }
  func.func @transform_3(%arg0: i32) -> (i32, i32) {
    %c0_i32 = arith.constant 0 : i32
    %c0_i32_0 = arith.constant 0 : i32
    %c0_i32_1 = arith.constant 0 : i32
    return %c0_i32, %c0_i32_0 : i32, i32
  }
  func.func @transform_4(%arg0: i32) -> (i32, i32) {
    %c0_i32 = arith.constant 0 : i32
    %c0_i32_0 = arith.constant 0 : i32
    %c0_i32_1 = arith.constant 0 : i32
    return %c0_i32, %c0_i32_0 : i32, i32
  }
  func.func @transform_5(%arg0: i32) -> (i32, i32) {
    %c0_i32 = arith.constant 0 : i32
    %c0_i32_0 = arith.constant 0 : i32
    %c0_i32_1 = arith.constant 0 : i32
    return %c0_i32, %c0_i32_0 : i32, i32
  }
  func.func @transform_6(%arg0: i32) -> (i32, i32) {
    %c0_i32 = arith.constant 0 : i32
    %c0_i32_0 = arith.constant 0 : i32
    %c0_i32_1 = arith.constant 0 : i32
    return %c0_i32, %c0_i32_0 : i32, i32
  }
  func.func @transform_7(%arg0: i32) -> (i32, i32, i32) {
    %c0_i32 = arith.constant 0 : i32
    %c0_i32_0 = arith.constant 0 : i32
    %c0_i32_1 = arith.constant 0 : i32
    return %arg0, %c0_i32, %c0_i32_0 : i32, i32, i32
  }
}

</mosaic_0001>

<llo_original>
// kernel: tpu_custom_call.1
$region0: #{tpu_custom_call.1}
  #allocation0 [shape = 'u32[]', space=smem, size = 0x4, offset = 0x4, fixed_abs, tag = 'smem constant byte address 0x4 - core index']
  #allocation1 [shape = 'u32[144,128]{1,0:T(1,128)}', space=vmem, size = 0x12000, scoped, tag = 'internal scratch']
  #allocation2 [shape = 'f32[4,362]{1,0:T(4,128)}', space=vmem, size = 0x1800, scoped, tag = 'scratch operand']
  #allocation3 [shape = 'f32[4,362]{1,0:T(4,128)}', space=vmem, size = 0x1800, scoped, tag = 'scratch operand']
  %s0 = inlined_call_operand.hbm [shape: f32[2,4,362], index: 0, kind: input, shape index: {}]
  %s1 = inlined_call_operand.hbm [shape: f32[2,4,362], index: 1, kind: input, shape index: {}]
  %s2 = inlined_call_operand.hbm [shape: f32[4,37], index: 2, kind: input, shape index: {}]
  %s3 = inlined_call_operand.vmem [shape: f32[4,37], index: 3, kind: input, shape index: {}]
  %s4 = inlined_call_operand.hbm [shape: f32[8,73], index: 4, kind: input, shape index: {}]
  %s5 = inlined_call_operand.vmem [shape: f32[4,9], index: 5, kind: input, shape index: {}]
  %s6 = inlined_call_operand.hbm [shape: f32[1,324], index: 6, kind: input, shape index: {}]
  %s7 = inlined_call_operand.hbm [shape: f32[2,4,324], index: 7, kind: output, shape index: {}]
  %s8 = sld [smem:[#allocation0]]
  $region81: #{tpu_custom_call.1} parent=0
    _
  %s10 = ssub.s32 1, %s8
  %s11 = scalar_select 0, %s10, %s8
  $region1: #{tpu_custom_call.1} parent=0
    #allocation4 [shape = 'u8[12288]{0}', space=vmem, size = 0x3000, scoped, tag = 'input window, operand 0']
    #allocation5 [shape = 's32[2]{0}', space=sflag, size = 0x8, scoped, tag = 'scoped memory for tpu_custom_call.1']
    #allocation6 [shape = 's32[2]{0}', space=sflag, size = 0x8, scoped, tag = 'scoped memory for tpu_custom_call.1']
    #allocation7 [shape = 'u8[12288]{0}', space=vmem, size = 0x3000, scoped, tag = 'input window, operand 1']
    #allocation8 [shape = 's32[2]{0}', space=sflag, size = 0x8, scoped, tag = 'scoped memory for tpu_custom_call.1']
    #allocation9 [shape = 'u8[2048]{0}', space=vmem, size = 0x800, scoped, tag = 'input window, operand 2, single buffered']
    #allocation10 [shape = 'u8[4096]{0}', space=vmem, size = 0x1000, scoped, tag = 'input window, operand 4, single buffered']
    #allocation11 [shape = 's32[1]{0}', space=sflag, size = 0x4, scoped, tag = 'scoped memory for tpu_custom_call.1']
    #allocation12 [shape = 'u8[1536]{0}', space=vmem, size = 0x800, scoped, tag = 'input window, operand 6, single buffered']
    #allocation13 [shape = 'u8[12288]{0}', space=vmem, size = 0x3000, scoped, tag = 'output window, operand 0']
    %12 = vsyncpa [#allocation5], 0
    %s13 = scalar_lea.sflag [#allocation5], 1
    %14 = vsyncpa %s13, 0
    %15 = vsyncpa [#allocation8], 0
    %s16 = scalar_lea.sflag [#allocation8], 1
    %17 = vsyncpa %s16, 0
    %18 = vsyncpa [#allocation11], 0
    %19 = vsyncpa [#allocation6], 0
    %s20 = scalar_lea.sflag [#allocation6], 1
    %21 = vsyncpa %s20, 0
    loop: start=0, step=1, limit=4
    $region2: #{tpu_custom_call.1} parent=1 // loop_pre_header
      _
    $region3: #{tpu_custom_call.1} parent=1 // loop_header
      %s23 = sphi 0, %s27
      %p24 = scmp.ge.s32.totalorder %s23, 4
      %s33 = sphi 0, %s35
      %s36 = sphi 0, %s33
      %s37 = sphi 0, %s36
      %s53 = sphi 0, %s37
      %s59 = sphi 0, %s61
      %s62 = sphi 0, %s59
      %s63 = sphi 0, %s62
      %s79 = sphi 0, %s63
      %s83 = sphi 0, %s83
      %s85 = sphi 0, %s83
      %s86 = sphi 0, %s85
      %s100 = sphi 0, %s86
      %s104 = sphi 0, %s104
      %s106 = sphi 0, %s104
      %s107 = sphi 0, %s106
      %s121 = sphi 0, %s107
      %s125 = sphi 0, %s125
      %s127 = sphi 0, %s125
      %s128 = sphi 0, %s127
      %s142 = sphi 0, %s128
      %s146 = sphi 0, %s146
      %s148 = sphi 0, %s146
      %s149 = sphi 0, %s148
      %s163 = sphi 0, %s149
      %s167 = sphi 0, %s167
      %s169 = sphi 0, %s167
      %s170 = sphi 0, %s169
      %s184 = sphi 0, %s170
      %s190 = sphi 0, %s192
      %s193 = sphi 0, %s190
      %s194 = sphi 0, %s193
      %s210 = sphi 0, %s194
    $region4: #{tpu_custom_call.1} parent=1 // loop_header_branch
      %26 = sbr.rel (%p24) target = $region8
    $region5: #{tpu_custom_call.1} parent=1 // loop_body
      %s28 = ssub.s32 %s23, 1
      %s29 = ssub.s32 %s23, 2
      %s30 = sadd.s32 %s23, 1
      %s31 = ssub.s32 %s23, %s30
      %p32 = scmp.eq.s32.totalorder %s31, 0
      %s34 = sadd.s32 %s33, 1
      %s35 = scalar_select %p32, %s33, %s34
      %p38 = pneg %p32
      %p39 = scmp.eq.s32.totalorder %s23, 1
      %p40 = por %p38, %p39
      %p41 = scmp.ne.s32.totalorder %s33, %s36
      %p42 = scmp.eq.s32.totalorder %s23, 0
      %p43 = por %p41, %p42
      %p44 = scmp.ne.s32.totalorder %s33, %s36
      %p45 = scmp.eq.s32.totalorder %s28, 1
      %p46 = por %p44, %p45
      %p47 = scmp.ne.s32.totalorder %s36, %s37
      %p48 = scmp.eq.s32.totalorder %s28, 0
      %p49 = por %p47, %p48
      %p50 = scmp.ne.s32.totalorder %s36, %s37
      %p51 = scmp.eq.s32.totalorder %s29, 1
      %p52 = por %p50, %p51
      %p54 = scmp.ne.s32.totalorder %s37, %s53
      %p55 = scmp.eq.s32.totalorder %s29, 0
      %p56 = por %p54, %p55
      %s57 = ssub.s32 %s23, %s30
      %p58 = scmp.eq.s32.totalorder %s57, 0
      %s60 = sadd.s32 %s59, 1
      %s61 = scalar_select %p58, %s59, %s60
      %p64 = pneg %p58
      %p65 = scmp.eq.s32.totalorder %s23, 1
      %p66 = por %p64, %p65
      %p67 = scmp.ne.s32.totalorder %s59, %s62
      %p68 = scmp.eq.s32.totalorder %s23, 0
      %p69 = por %p67, %p68
      %p70 = scmp.ne.s32.totalorder %s59, %s62
      %p71 = scmp.eq.s32.totalorder %s28, 1
      %p72 = por %p70, %p71
      %p73 = scmp.ne.s32.totalorder %s62, %s63
      %p74 = scmp.eq.s32.totalorder %s28, 0
      %p75 = por %p73, %p74
      %p76 = scmp.ne.s32.totalorder %s62, %s63
      %p77 = scmp.eq.s32.totalorder %s29, 1
      %p78 = por %p76, %p77
      %p80 = scmp.ne.s32.totalorder %s63, %s79
      %p81 = scmp.eq.s32.totalorder %s29, 0
      %p82 = por %p80, %p81
      %s84 = sadd.s32 %s83, 1
      %p87 = scmp.eq.s32.totalorder %s23, 1
      %p88 = scmp.ne.s32.totalorder %s83, %s85
      %p89 = scmp.eq.s32.totalorder %s23, 0
      %p90 = por %p88, %p89
      %p91 = scmp.ne.s32.totalorder %s83, %s85
      %p92 = scmp.eq.s32.totalorder %s28, 1
      %p93 = por %p91, %p92
      %p94 = scmp.ne.s32.totalorder %s85, %s86
      %p95 = scmp.eq.s32.totalorder %s28, 0
      %p96 = por %p94, %p95
      %p97 = scmp.ne.s32.totalorder %s85, %s86
      %p98 = scmp.eq.s32.totalorder %s29, 1
      %p99 = por %p97, %p98
      %p101 = scmp.ne.s32.totalorder %s86, %s100
      %p102 = scmp.eq.s32.totalorder %s29, 0
      %p103 = por %p101, %p102
      %s105 = sadd.s32 %s104, 1
      %p108 = scmp.eq.s32.totalorder %s23, 1
      %p109 = scmp.ne.s32.totalorder %s104, %s106
      %p110 = scmp.eq.s32.totalorder %s23, 0
      %p111 = por %p109, %p110
      %p112 = scmp.ne.s32.totalorder %s104, %s106
      %p113 = scmp.eq.s32.totalorder %s28, 1
      %p114 = por %p112, %p113
      %p115 = scmp.ne.s32.totalorder %s106, %s107
      %p116 = scmp.eq.s32.totalorder %s28, 0
      %p117 = por %p115, %p116
      %p118 = scmp.ne.s32.totalorder %s106, %s107
      %p119 = scmp.eq.s32.totalorder %s29, 1
      %p120 = por %p118, %p119
      %p122 = scmp.ne.s32.totalorder %s107, %s121
      %p123 = scmp.eq.s32.totalorder %s29, 0
      %p124 = por %p122, %p123
      %s126 = sadd.s32 %s125, 1
      %p129 = scmp.eq.s32.totalorder %s23, 1
      %p130 = scmp.ne.s32.totalorder %s125, %s127
      %p131 = scmp.eq.s32.totalorder %s23, 0
      %p132 = por %p130, %p131
      %p133 = scmp.ne.s32.totalorder %s125, %s127
      %p134 = scmp.eq.s32.totalorder %s28, 1
      %p135 = por %p133, %p134
      %p136 = scmp.ne.s32.totalorder %s127, %s128
      %p137 = scmp.eq.s32.totalorder %s28, 0
      %p138 = por %p136, %p137
      %p139 = scmp.ne.s32.totalorder %s127, %s128
      %p140 = scmp.eq.s32.totalorder %s29, 1
      %p141 = por %p139, %p140
      %p143 = scmp.ne.s32.totalorder %s128, %s142
      %p144 = scmp.eq.s32.totalorder %s29, 0
      %p145 = por %p143, %p144
      %s147 = sadd.s32 %s146, 1
      %p150 = scmp.eq.s32.totalorder %s23, 1
      %p151 = scmp.ne.s32.totalorder %s146, %s148
      %p152 = scmp.eq.s32.totalorder %s23, 0
      %p153 = por %p151, %p152
      %p154 = scmp.ne.s32.totalorder %s146, %s148
      %p155 = scmp.eq.s32.totalorder %s28, 1
      %p156 = por %p154, %p155
      %p157 = scmp.ne.s32.totalorder %s148, %s149
      %p158 = scmp.eq.s32.totalorder %s28, 0
      %p159 = por %p157, %p158
      %p160 = scmp.ne.s32.totalorder %s148, %s149
      %p161 = scmp.eq.s32.totalorder %s29, 1
      %p162 = por %p160, %p161
      %p164 = scmp.ne.s32.totalorder %s149, %s163
      %p165 = scmp.eq.s32.totalorder %s29, 0
      %p166 = por %p164, %p165
      %s168 = sadd.s32 %s167, 1
      %p171 = scmp.eq.s32.totalorder %s23, 1
      %p172 = scmp.ne.s32.totalorder %s167, %s169
      %p173 = scmp.eq.s32.totalorder %s23, 0
      %p174 = por %p172, %p173
      %p175 = scmp.ne.s32.totalorder %s167, %s169
      %p176 = scmp.eq.s32.totalorder %s28, 1
      %p177 = por %p175, %p176
      %p178 = scmp.ne.s32.totalorder %s169, %s170
      %p179 = scmp.eq.s32.totalorder %s28, 0
      %p180 = por %p178, %p179
      %p181 = scmp.ne.s32.totalorder %s169, %s170
      %p182 = scmp.eq.s32.totalorder %s29, 1
      %p183 = por %p181, %p182
      %p185 = scmp.ne.s32.totalorder %s170, %s184
      %p186 = scmp.eq.s32.totalorder %s29, 0
      %p187 = por %p185, %p186
      %s188 = ssub.s32 %s23, %s30
      %p189 = scmp.eq.s32.totalorder %s188, 0
      %s191 = sadd.s32 %s190, 1
      %s192 = scalar_select %p189, %s190, %s191
      %p195 = pneg %p189
      %p196 = scmp.eq.s32.totalorder %s23, 1
      %p197 = por %p195, %p196
      %p198 = scmp.ne.s32.totalorder %s190, %s193
      %p199 = scmp.eq.s32.totalorder %s23, 0
      %p200 = por %p198, %p199
      %p201 = scmp.ne.s32.totalorder %s190, %s193
      %p202 = scmp.eq.s32.totalorder %s28, 1
      %p203 = por %p201, %p202
      %p204 = scmp.ne.s32.totalorder %s193, %s194
      %p205 = scmp.eq.s32.totalorder %s28, 0
      %p206 = por %p204, %p205
      %p207 = scmp.ne.s32.totalorder %s193, %s194
      %p208 = scmp.eq.s32.totalorder %s29, 1
      %p209 = por %p207, %p208
      %p211 = scmp.ne.s32.totalorder %s194, %s210
      %p212 = scmp.eq.s32.totalorder %s29, 0
      %p213 = por %p211, %p212
      %p214 = scmp.le.s32.totalorder 1, %s23
      %p215 = scmp.lt.s32.totalorder %s23, 3
      %p216 = pnand %p214, %p215
      %p217 = pneg %p216
      // Predicated region
      $region9: #{tpu_custom_call.1} parent=5 // pred_check
        _
      $region10: #{tpu_custom_call.1} parent=5 // pred_check_branch
        %219 = sbr.rel (%p216) target = $region12
      $region11: #{tpu_custom_call.1} parent=5 // pred_region
        %s220 = ssub.s32 %s23, 1
        // Predicated region
        $region13: #{tpu_custom_call.1} parent=11 // pred_check
          %p221 = pneg %p96
        $region14: #{tpu_custom_call.1} parent=11 // pred_check_branch
          %223 = sbr.rel (%p221) target = $region16
        $region15: #{tpu_custom_call.1} parent=11 // pred_region
          %s225 = ssub.s32 64, 64
          %226 = vsyncadd [#allocation8], %s225
          %s228 = sshll.u32 [#allocation9], 4
          %s229 = int_to_ptr.vmem [resolvable:$true] %s228
          %231 = dma.hbm_to_vmem [thread:$0]  %s2, 64, %s229, [#allocation8]
        $region16: #{tpu_custom_call.1} parent=11 // pred_fallthru
          _
        // Predicated region
        $region17: #{tpu_custom_call.1} parent=11 // pred_check
          %p232 = pneg %p117
        $region18: #{tpu_custom_call.1} parent=11 // pred_check_branch
          %234 = sbr.rel (%p232) target = $region20
        $region19: #{tpu_custom_call.1} parent=11 // pred_region
          _
        $region20: #{tpu_custom_call.1} parent=11 // pred_fallthru
          _
        // Predicated region
        $region21: #{tpu_custom_call.1} parent=11 // pred_check
          %p235 = pneg %p138
        $region22: #{tpu_custom_call.1} parent=11 // pred_check_branch
          %237 = sbr.rel (%p235) target = $region24
        $region23: #{tpu_custom_call.1} parent=11 // pred_region
          %s239 = ssub.s32 128, 128
          %240 = vsyncadd [#allocation11], %s239
          %s242 = sshll.u32 [#allocation10], 4
          %s243 = int_to_ptr.vmem [resolvable:$true] %s242
          %245 = dma.hbm_to_vmem [thread:$0]  %s4, 128, %s243, [#allocation11]
        $region24: #{tpu_custom_call.1} parent=11 // pred_fallthru
          _
        // Predicated region
        $region25: #{tpu_custom_call.1} parent=11 // pred_check
          %p246 = pneg %p159
        $region26: #{tpu_custom_call.1} parent=11 // pred_check_branch
          %248 = sbr.rel (%p246) target = $region28
        $region27: #{tpu_custom_call.1} parent=11 // pred_region
          _
        $region28: #{tpu_custom_call.1} parent=11 // pred_fallthru
          _
        // Predicated region
        $region29: #{tpu_custom_call.1} parent=11 // pred_check
          %p249 = pneg %p180
        $region30: #{tpu_custom_call.1} parent=11 // pred_check_branch
          %251 = sbr.rel (%p249) target = $region32
        $region31: #{tpu_custom_call.1} parent=11 // pred_region
          %s253 = ssub.s32 48, 48
          %254 = vsyncadd [#allocation11], %s253
          %s256 = sshll.u32 [#allocation12], 4
          %s257 = int_to_ptr.vmem [resolvable:$true] %s256
          %259 = dma.hbm_to_vmem [thread:$0]  %s6, 48, %s257, [#allocation11]
        $region32: #{tpu_custom_call.1} parent=11 // pred_fallthru
          _
      $region12: #{tpu_custom_call.1} parent=5 // pred_fallthru
        _
      %p260 = scmp.lt.s32.totalorder %s23, 2
      // Predicated region
      $region33: #{tpu_custom_call.1} parent=5 // pred_check
        %p261 = pneg %p260
      $region34: #{tpu_custom_call.1} parent=5 // pred_check_branch
        %263 = sbr.rel (%p261) target = $region36
      $region35: #{tpu_custom_call.1} parent=5 // pred_region
        // Predicated region
        $region37: #{tpu_custom_call.1} parent=35 // pred_check
          %p264 = pneg %p43
        $region38: #{tpu_custom_call.1} parent=35 // pred_check_branch
          %266 = sbr.rel (%p264) target = $region40
        $region39: #{tpu_custom_call.1} parent=35 // pred_region
          %s267 = sand.u32 %s33, 1
          %s268 = scalar_lea.sflag [#allocation5], %s267
          %s269 = sand.u32 %s33, 1
          %s270 = smul.addr %s269, 12
          %s271 = scalar_lea.vmem [#allocation4], %s270
          %s273 = ssub.s32 192, 192
          %274 = vsyncadd %s268, %s273
          %s275 = smul.addr %s23, 3
          %s276 = smul.addr %s275, 64
          %s277 = scalar_lea.hbm %s0, %s276
          %s279 = sshll.u32 %s271, 4
          %s280 = int_to_ptr.vmem [resolvable:$true] %s279
          %282 = dma.hbm_to_vmem [thread:$0]  %s277, 192, %s280, %s268
        $region40: #{tpu_custom_call.1} parent=35 // pred_fallthru
          _
        // Predicated region
        $region41: #{tpu_custom_call.1} parent=35 // pred_check
          %p283 = pneg %p69
        $region42: #{tpu_custom_call.1} parent=35 // pred_check_branch
          %285 = sbr.rel (%p283) target = $region44
        $region43: #{tpu_custom_call.1} parent=35 // pred_region
          %s286 = sand.u32 %s23, 1
          %s287 = scalar_lea.sflag [#allocation8], %s286
          %s288 = sand.u32 %s59, 1
          %s289 = smul.addr %s288, 12
          %s290 = scalar_lea.vmem [#allocation7], %s289
          %s292 = ssub.s32 192, 192
          %293 = vsyncadd %s287, %s292
          %s294 = smul.addr %s23, 3
          %s295 = smul.addr %s294, 64
          %s296 = scalar_lea.hbm %s1, %s295
          %s298 = sshll.u32 %s290, 4
          %s299 = int_to_ptr.vmem [resolvable:$true] %s298
          %301 = dma.hbm_to_vmem [thread:$0]  %s296, 192, %s299, %s287
        $region44: #{tpu_custom_call.1} parent=35 // pred_fallthru
          _
      $region36: #{tpu_custom_call.1} parent=5 // pred_fallthru
        _
      %p302 = scmp.le.s32.totalorder 1, %s23
      %p303 = scmp.lt.s32.totalorder %s23, 3
      %p304 = pnand %p302, %p303
      %p305 = pneg %p304
      // Predicated region
      $region45: #{tpu_custom_call.1} parent=5 // pred_check
        _
      $region46: #{tpu_custom_call.1} parent=5 // pred_check_branch
        %307 = sbr.rel (%p304) target = $region48
      $region47: #{tpu_custom_call.1} parent=5 // pred_region
        %s308 = ssub.s32 %s23, 1
        %s309 = sand.u32 %s36, 1
        %s310 = scalar_lea.sflag [#allocation5], %s309
        %s311 = sand.u32 %s36, 1
        %s312 = smul.addr %s311, 12
        %s313 = scalar_lea.vmem [#allocation4], %s312
        // Predicated region
        $region49: #{tpu_custom_call.1} parent=47 // pred_check
          %p314 = pneg %p49
        $region50: #{tpu_custom_call.1} parent=47 // pred_check_branch
          %316 = sbr.rel (%p314) target = $region52
        $region51: #{tpu_custom_call.1} parent=47 // pred_region
          %317 = dma.done %s310, 192
        $region52: #{tpu_custom_call.1} parent=47 // pred_fallthru
          _
        %s318 = sand.u32 %s28, 1
        %s319 = scalar_lea.sflag [#allocation8], %s318
        %s320 = sand.u32 %s62, 1
        %s321 = smul.addr %s320, 12
        %s322 = scalar_lea.vmem [#allocation7], %s321
        // Predicated region
        $region53: #{tpu_custom_call.1} parent=47 // pred_check
          %p323 = pneg %p75
        $region54: #{tpu_custom_call.1} parent=47 // pred_check_branch
          %325 = sbr.rel (%p323) target = $region56
        $region55: #{tpu_custom_call.1} parent=47 // pred_region
          %326 = dma.done %s319, 192
        $region56: #{tpu_custom_call.1} parent=47 // pred_fallthru
          _
        // Predicated region
        $region57: #{tpu_custom_call.1} parent=47 // pred_check
          %p327 = pneg %p96
        $region58: #{tpu_custom_call.1} parent=47 // pred_check_branch
          %329 = sbr.rel (%p327) target = $region60
        $region59: #{tpu_custom_call.1} parent=47 // pred_region
          %330 = dma.done [#allocation8], 64
        $region60: #{tpu_custom_call.1} parent=47 // pred_fallthru
          _
        // Predicated region
        $region61: #{tpu_custom_call.1} parent=47 // pred_check
          %p331 = pneg %p138
        $region62: #{tpu_custom_call.1} parent=47 // pred_check_branch
          %333 = sbr.rel (%p331) target = $region64
        $region63: #{tpu_custom_call.1} parent=47 // pred_region
          %334 = dma.done [#allocation11], 128
        $region64: #{tpu_custom_call.1} parent=47 // pred_fallthru
          _
        // Predicated region
        $region65: #{tpu_custom_call.1} parent=47 // pred_check
          %p335 = pneg %p180
        $region66: #{tpu_custom_call.1} parent=47 // pred_check_branch
          %337 = sbr.rel (%p335) target = $region68
        $region67: #{tpu_custom_call.1} parent=47 // pred_region
          %338 = dma.done [#allocation11], 48
        $region68: #{tpu_custom_call.1} parent=47 // pred_fallthru
          _
        %s339 = sand.u32 %s36, 1
        %s340 = scalar_lea.sflag [#allocation5], %s339
        %s341 = sand.u32 %s36, 1
        %s342 = smul.addr %s341, 12
        %s343 = scalar_lea.vmem [#allocation4], %s342
        %p344 = pneg %p49
        %p345 = pneg %p46
        %s346 = sand.u32 %s28, 1
        %s347 = scalar_lea.sflag [#allocation8], %s346
        %s348 = sand.u32 %s62, 1
        %s349 = smul.addr %s348, 12
        %s350 = scalar_lea.vmem [#allocation7], %s349
        %p351 = pneg %p75
        %p352 = pneg %p72
        %p353 = pneg %p96
        %p354 = pneg %p93
        %p355 = pneg %p117
        %p356 = pneg %p114
        %p357 = pneg %p138
        %p358 = pneg %p135
        %p359 = pneg %p159
        %p360 = pneg %p156
        %p361 = pneg %p180
        %p362 = pneg %p177
        %p363 = pneg %p206
        %p364 = pneg %p203
        %s365 = sand.u32 %s193, 1
        %s366 = scalar_lea.sflag [#allocation6], %s365
        %s367 = sand.u32 %s193, 1
        %s368 = smul.addr %s367, 12
        %s369 = scalar_lea.vmem [#allocation13], %s368
        %v370 = vld [vmem:[#allocation12] sm:$0x7]
        %v371 = vld [vmem:[%s313] sm:$0xff]
        %v372 = vld [vmem:[%s313 + $0x8] sm:$0xf]
        %v373 = vld [vmem:[%s322] sm:$0xff]
        %v374 = vld [vmem:[%s322 + $0x8] sm:$0xf]
        %v377 = vcombine.high %v371, %v371
        %v379 = vcombine.low %v371, %v371
        %v380 = vcombine.low %v372, %v372
        %381 = vrot.lane.b32.xlu0 %v379, 127
        %v382 = vpop.permute.xlu0 %381
        %383 = vrot.lane.b32.xlu0 %v371, 127
        %v384 = vpop.permute.xlu0 %383
        %385 = vrot.lane.b32.xlu0 %v380, 127
        %v386 = vpop.permute.xlu0 %385
        %vm387 = vcmask 1039360
        %v388 = vsel %vm387, %v382, %v384
        %v389 = vsel %vm387, %v384, %v386
        %393 = vrot.lane.b32.xlu0 %v371, 126
        %v394 = vpop.permute.xlu0 %393
        %395 = vrot.lane.b32.xlu0 %v377, 126
        %v396 = vpop.permute.xlu0 %395
        %397 = vrot.lane.b32.xlu0 %v372, 126
        %v398 = vpop.permute.xlu0 %397
        %vm399 = vcmask 1031168
        %v400 = vsel %vm399, %v394, %v396
        %v401 = vsel %vm399, %v396, %v398
        %405 = vrot.lane.b32.xlu0 %v379, 110
        %v406 = vpop.permute.xlu0 %405
        %407 = vrot.lane.b32.xlu0 %v371, 110
        %v408 = vpop.permute.xlu0 %407
        %409 = vrot.lane.b32.xlu0 %v380, 110
        %v410 = vpop.permute.xlu0 %409
        %vm411 = vcmask 900096
        %v412 = vsel %vm411, %v406, %v408
        %v413 = vsel %vm411, %v408, %v410
        %417 = vrot.lane.b32.xlu0 %v371, 109
        %v418 = vpop.permute.xlu0 %417
        %419 = vrot.lane.b32.xlu0 %v377, 109
        %v420 = vpop.permute.xlu0 %419
        %421 = vrot.lane.b32.xlu0 %v372, 109
        %v422 = vpop.permute.xlu0 %421
        %vm423 = vcmask 891904
        %v424 = vsel %vm423, %v418, %v420
        %v425 = vsel %vm423, %v420, %v422
        %429 = vrot.lane.b32.xlu0 %v379, 108
        %v430 = vpop.permute.xlu0 %429
        %431 = vrot.lane.b32.xlu0 %v371, 108
        %v432 = vpop.permute.xlu0 %431
        %433 = vrot.lane.b32.xlu0 %v380, 108
        %v434 = vpop.permute.xlu0 %433
        %vm435 = vcmask 883712
        %v436 = vsel %vm435, %v430, %v432
        %v437 = vsel %vm435, %v432, %v434
        %441 = vrot.lane.b32.xlu0 %v371, 92
        %v442 = vpop.permute.xlu0 %441
        %443 = vrot.lane.b32.xlu0 %v377, 92
        %v444 = vpop.permute.xlu0 %443
        %445 = vrot.lane.b32.xlu0 %v372, 92
        %v446 = vpop.permute.xlu0 %445
        %vm447 = vcmask 752640
        %v448 = vsel %vm447, %v442, %v444
        %v449 = vsel %vm447, %v444, %v446
        %453 = vrot.lane.b32.xlu0 %v379, 91
        %v454 = vpop.permute.xlu0 %453
        %455 = vrot.lane.b32.xlu0 %v371, 91
        %v456 = vpop.permute.xlu0 %455
        %457 = vrot.lane.b32.xlu0 %v380, 91
        %v458 = vpop.permute.xlu0 %457
        %vm459 = vcmask 744448
        %v460 = vsel %vm459, %v454, %v456
        %v461 = vsel %vm459, %v456, %v458
        %465 = vrot.lane.b32.xlu0 %v371, 90
        %v466 = vpop.permute.xlu0 %465
        %467 = vrot.lane.b32.xlu0 %v377, 90
        %v468 = vpop.permute.xlu0 %467
        %469 = vrot.lane.b32.xlu0 %v372, 90
        %v470 = vpop.permute.xlu0 %469
        %vm471 = vcmask 736256
        %v472 = vsel %vm471, %v466, %v468
        %v473 = vsel %vm471, %v468, %v470
        %vm477 = vcmask 1043456
        %v478 = vsel %vm477, %v371, %v388
        %v479 = vsel %vm477, %v377, %v389
        %v480 = vsel %vm477, %v372, %v386
        %v481 = vsel %vm477, %v400, %v412
        %v482 = vsel %vm477, %v401, %v413
        %v483 = vsel %vm477, %v398, %v410
        %v484 = vsel %vm477, %v424, %v436
        %v485 = vsel %vm477, %v425, %v437
        %v486 = vsel %vm477, %v422, %v434
        %v487 = vsel %vm477, %v448, %v460
        %v488 = vsel %vm477, %v449, %v461
        %v489 = vsel %vm477, %v446, %v458
        %v490 = vsel %vm477, %v472, 1.0
        %v491 = vsel %vm477, %v473, 1.0
        %v492 = vsel %vm477, %v470, 1.0
        %v493 = vld [vmem:[#allocation9] sm:$0xf]
        %vm494 = vcmask 302080
        %v496 = vsel %vm494, %v493, 0
        %vm498 = vcmask 1044480
        %v500 = vsel %vm498, %v490, 0
        %v503 = vsel %vm498, %v491, 0
        %v506 = vsel %vm498, %v492, 0
        %508 = vmatprep.subr.mxu0 0.0
        %509 = vmatpush1.msra.mxu0 0.0
        %510 = vmatprep.subr.mxu0 0.0
        %511 = vmatpush1.msra.mxu0 0.0
        %512 = vmatprep.subr.mxu0 0.0
        %513 = vmatpush1.msra.mxu0 0.0
        %514 = vmatprep.subr.mxu0 0.0
        %515 = vmatpush1.msra.mxu0 0.0
        %516 = vmatprep.subr.mxu0 0.0
        %517 = vmatpush1.msra.mxu0 0.0
        %518 = vmatprep.subr.mxu0 0.0
        %519 = vmatpush1.msra.mxu0 0.0
        %520 = vmatprep.subr.mxu0 0.0
        %521 = vmatpush1.msra.mxu0 0.0
        %522 = vmatprep.subr.mxu0 0.0
        %523 = vmatpush1.msra.mxu0 0.0
        %524 = vmatprep.subr.mxu0 0.0
        %525 = vmatpush1.msra.mxu0 0.0
        %526 = vmatprep.subr.mxu0 0.0
        %527 = vmatpush1.msra.mxu0 0.0
        %528 = vmatprep.subr.mxu0 0.0
        %529 = vmatpush1.msra.mxu0 0.0
        %530 = vmatprep.subr.mxu0 %v503
        %531 = vmatpush1.msra.mxu0 %v500
        %532 = vmatprep.subr.mxu0 %v488
        %533 = vmatpush1.msra.mxu0 %v487
        %534 = vmatprep.subr.mxu0 %v485
        %535 = vmatpush1.msra.mxu0 %v484
        %536 = vmatprep.subr.mxu0 %v482
        %537 = vmatpush1.msra.mxu0 %v481
        %538 = vmatprep.subr.mxu0 %v479
        %539 = vmatpush1.msra.mxu0 %v478
        %540 = vmatprep.subr.mxu0 0.0
        %541 = vmatpush2.msra.mxu0 0.0
        %542 = vmatprep.subr.mxu0 0.0
        %543 = vmatpush2.msra.mxu0 0.0
        %544 = vmatprep.subr.mxu0 0.0
        %545 = vmatpush2.msra.mxu0 0.0
        %546 = vmatprep.subr.mxu0 0.0
        %547 = vmatpush2.msra.mxu0 0.0
        %548 = vmatprep.subr.mxu0 0.0
        %549 = vmatpush2.msra.mxu0 0.0
        %550 = vmatprep.subr.mxu0 0.0
        %551 = vmatpush2.msra.mxu0 0.0
        %552 = vmatprep.subr.mxu0 0.0
        %553 = vmatpush2.msra.mxu0 0.0
        %554 = vmatprep.subr.mxu0 0.0
        %555 = vmatpush2.msra.mxu0 0.0
        %556 = vmatprep.subr.mxu0 0.0
        %557 = vmatpush2.msra.mxu0 0.0
        %558 = vmatprep.subr.mxu0 0.0
        %559 = vmatpush2.msra.mxu0 0.0
        %560 = vmatprep.subr.mxu0 0.0
        %561 = vmatpush2.msra.mxu0 0.0
        %562 = vmatprep.subr.mxu0 0.0
        %563 = vmatpush2.msra.mxu0 0.0
        %564 = vmatprep.subr.mxu0 0.0
        %565 = vmatpush2.msra.mxu0 0.0
        %566 = vmatprep.subr.mxu0 0.0
        %567 = vmatpush2.msra.mxu0 0.0
        %568 = vmatprep.subr.mxu0 0.0
        %569 = vmatpush2.msra.mxu0 0.0
        %570 = vmatprep.subr.mxu0 0.0
        %571 = vmatpush2.msra.mxu0 0.0
        %572 = vmatprep.mubr.f32.mxu0 0.0
        %573 = vmatmul.mubr.f32.gmra.mxu0 %v496
        %v574 = vpop.f32.mrf.mxu0
        %v575 = vadd.f32 0.0, %v574
        %v576 = vpop.f32.mrf.mxu0
        %v577 = vadd.f32 0.0, %v576
        %578 = vdwg.mxu0
        %579 = vmatprep.subr.mxu0 0.0
        %580 = vmatpush1.msra.mxu0 0.0
        %581 = vmatprep.subr.mxu0 0.0
        %582 = vmatpush1.msra.mxu0 0.0
        %583 = vmatprep.subr.mxu0 0.0
        %584 = vmatpush1.msra.mxu0 0.0
        %585 = vmatprep.subr.mxu0 0.0
        %586 = vmatpush1.msra.mxu0 0.0
        %587 = vmatprep.subr.mxu0 0.0
        %588 = vmatpush1.msra.mxu0 0.0
        %589 = vmatprep.subr.mxu0 0.0
        %590 = vmatpush1.msra.mxu0 0.0
        %591 = vmatprep.subr.mxu0 0.0
        %592 = vmatpush1.msra.mxu0 0.0
        %593 = vmatprep.subr.mxu0 0.0
        %594 = vmatpush1.msra.mxu0 0.0
        %595 = vmatprep.subr.mxu0 0.0
        %596 = vmatpush1.msra.mxu0 0.0
        %597 = vmatprep.subr.mxu0 0.0
        %598 = vmatpush1.msra.mxu0 0.0
        %599 = vmatprep.subr.mxu0 0.0
        %600 = vmatpush1.msra.mxu0 0.0
        %601 = vmatprep.subr.mxu0 0.0
        %602 = vmatpush1.msra.mxu0 %v506
        %603 = vmatprep.subr.mxu0 0.0
        %604 = vmatpush1.msra.mxu0 %v489
        %605 = vmatprep.subr.mxu0 0.0
        %606 = vmatpush1.msra.mxu0 %v486
        %607 = vmatprep.subr.mxu0 0.0
        %608 = vmatpush1.msra.mxu0 %v483
        %609 = vmatprep.subr.mxu0 0.0
        %610 = vmatpush1.msra.mxu0 %v480
        %611 = vmatprep.subr.mxu0 0.0
        %612 = vmatpush2.msra.mxu0 0.0
        %613 = vmatprep.subr.mxu0 0.0
        %614 = vmatpush2.msra.mxu0 0.0
        %615 = vmatprep.subr.mxu0 0.0
        %616 = vmatpush2.msra.mxu0 0.0
        %617 = vmatprep.subr.mxu0 0.0
        %618 = vmatpush2.msra.mxu0 0.0
        %619 = vmatprep.subr.mxu0 0.0
        %620 = vmatpush2.msra.mxu0 0.0
        %621 = vmatprep.subr.mxu0 0.0
        %622 = vmatpush2.msra.mxu0 0.0
        %623 = vmatprep.subr.mxu0 0.0
        %624 = vmatpush2.msra.mxu0 0.0
        %625 = vmatprep.subr.mxu0 0.0
        %626 = vmatpush2.msra.mxu0 0.0
        %627 = vmatprep.subr.mxu0 0.0
        %628 = vmatpush2.msra.mxu0 0.0
        %629 = vmatprep.subr.mxu0 0.0
        %630 = vmatpush2.msra.mxu0 0.0
        %631 = vmatprep.subr.mxu0 0.0
        %632 = vmatpush2.msra.mxu0 0.0
        %633 = vmatprep.subr.mxu0 0.0
        %634 = vmatpush2.msra.mxu0 0.0
        %635 = vmatprep.subr.mxu0 0.0
        %636 = vmatpush2.msra.mxu0 0.0
        %637 = vmatprep.subr.mxu0 0.0
        %638 = vmatpush2.msra.mxu0 0.0
        %639 = vmatprep.subr.mxu0 0.0
        %640 = vmatpush2.msra.mxu0 0.0
        %641 = vmatprep.subr.mxu0 0.0
        %642 = vmatpush2.msra.mxu0 0.0
        %643 = vmatprep.mubr.f32.mxu0 0.0
        %644 = vmatmul.mubr.f32.gmra.mxu0 %v496
        %v645 = vpop.f32.mrf.mxu0
        %v646 = vadd.f32 0.0, %v645
        %v647 = vpop.f32.mrf.mxu0
        %648 = vdwg.mxu0
        %v649 = vmax.f32 %v575, 0.0
        %v650 = vmax.f32 %v577, 0.0
        %v651 = vmax.f32 %v646, 0.0
        %v653 = vlaneseq
        %v654 = vshrl.u32 %v653, 7
        %v655 = vsub.s32 0, %v654
        %v656 = vrot.slane %v370, %v655
        %v657 = vlaneseq
        %v658 = vshrl.u32 %v657, 7
        %v659 = vsub.s32 1, %v658
        %v660 = vrot.slane %v370, %v659
        %v661 = vlaneseq
        %v662 = vshrl.u32 %v661, 7
        %v663 = vsub.s32 2, %v662
        %v664 = vrot.slane %v370, %v663
        %v668 = vmul.f32 %v649, %v656
        %v669 = vmul.f32 %v650, %v660
        %v670 = vmul.f32 %v651, %v664
        %v673 = vcombine.high %v373, %v373
        %v675 = vcombine.low %v373, %v373
        %v676 = vcombine.low %v374, %v374
        %677 = vrot.lane.b32.xlu0 %v675, 127
        %v678 = vpop.permute.xlu0 %677
        %679 = vrot.lane.b32.xlu0 %v373, 127
        %v680 = vpop.permute.xlu0 %679
        %681 = vrot.lane.b32.xlu0 %v676, 127
        %v682 = vpop.permute.xlu0 %681
        %v683 = vsel %vm387, %v678, %v680
        %v684 = vsel %vm387, %v680, %v682
        %688 = vrot.lane.b32.xlu0 %v373, 126
        %v689 = vpop.permute.xlu0 %688
        %690 = vrot.lane.b32.xlu0 %v673, 126
        %v691 = vpop.permute.xlu0 %690
        %692 = vrot.lane.b32.xlu0 %v374, 126
        %v693 = vpop.permute.xlu0 %692
        %v694 = vsel %vm399, %v689, %v691
        %v695 = vsel %vm399, %v691, %v693
        %699 = vrot.lane.b32.xlu0 %v675, 110
        %v700 = vpop.permute.xlu0 %699
        %701 = vrot.lane.b32.xlu0 %v373, 110
        %v702 = vpop.permute.xlu0 %701
        %703 = vrot.lane.b32.xlu0 %v676, 110
        %v704 = vpop.permute.xlu0 %703
        %v705 = vsel %vm411, %v700, %v702
        %v706 = vsel %vm411, %v702, %v704
        %710 = vrot.lane.b32.xlu0 %v373, 109
        %v711 = vpop.permute.xlu0 %710
        %712 = vrot.lane.b32.xlu0 %v673, 109
        %v713 = vpop.permute.xlu0 %712
        %714 = vrot.lane.b32.xlu0 %v374, 109
        %v715 = vpop.permute.xlu0 %714
        %v716 = vsel %vm423, %v711, %v713
        %v717 = vsel %vm423, %v713, %v715
        %721 = vrot.lane.b32.xlu0 %v675, 108
        %v722 = vpop.permute.xlu0 %721
        %723 = vrot.lane.b32.xlu0 %v373, 108
        %v724 = vpop.permute.xlu0 %723
        %725 = vrot.lane.b32.xlu0 %v676, 108
        %v726 = vpop.permute.xlu0 %725
        %v727 = vsel %vm435, %v722, %v724
        %v728 = vsel %vm435, %v724, %v726
        %732 = vrot.lane.b32.xlu0 %v373, 92
        %v733 = vpop.permute.xlu0 %732
        %734 = vrot.lane.b32.xlu0 %v673, 92
        %v735 = vpop.permute.xlu0 %734
        %736 = vrot.lane.b32.xlu0 %v374, 92
        %v737 = vpop.permute.xlu0 %736
        %v738 = vsel %vm447, %v733, %v735
        %v739 = vsel %vm447, %v735, %v737
        %743 = vrot.lane.b32.xlu0 %v675, 91
        %v744 = vpop.permute.xlu0 %743
        %745 = vrot.lane.b32.xlu0 %v373, 91
        %v746 = vpop.permute.xlu0 %745
        %747 = vrot.lane.b32.xlu0 %v676, 91
        %v748 = vpop.permute.xlu0 %747
        %v749 = vsel %vm459, %v744, %v746
        %v750 = vsel %vm459, %v746, %v748
        %754 = vrot.lane.b32.xlu0 %v373, 90
        %v755 = vpop.permute.xlu0 %754
        %756 = vrot.lane.b32.xlu0 %v673, 90
        %v757 = vpop.permute.xlu0 %756
        %758 = vrot.lane.b32.xlu0 %v374, 90
        %v759 = vpop.permute.xlu0 %758
        %v760 = vsel %vm471, %v755, %v757
        %v761 = vsel %vm471, %v757, %v759
        %v765 = vsel %vm477, %v373, %v683
        %v766 = vsel %vm477, %v673, %v684
        %v767 = vsel %vm477, %v374, %v682
        %v768 = vsel %vm477, %v694, %v705
        %v769 = vsel %vm477, %v695, %v706
        %v770 = vsel %vm477, %v693, %v704
        %v771 = vsel %vm477, %v716, %v727
        %v772 = vsel %vm477, %v717, %v728
        %v773 = vsel %vm477, %v715, %v726
        %v774 = vsel %vm477, %v738, %v749
        %v775 = vsel %vm477, %v739, %v750
        %v776 = vsel %vm477, %v737, %v748
        %v777 = vsel %vm477, %v760, 1.0
        %v778 = vsel %vm477, %v761, 1.0
        %v779 = vsel %vm477, %v759, 1.0
        %v780 = vld [vmem:[%s3] sm:$0xf]
        %v782 = vsel %vm494, %v780, 0
        %v785 = vsel %vm498, %v777, 0
        %v788 = vsel %vm498, %v778, 0
        %v791 = vsel %vm498, %v779, 0
        %793 = vmatprep.subr.mxu0 0.0
        %794 = vmatpush1.msra.mxu0 0.0
        %795 = vmatprep.subr.mxu0 0.0
        %796 = vmatpush1.msra.mxu0 0.0
        %797 = vmatprep.subr.mxu0 0.0
        %798 = vmatpush1.msra.mxu0 0.0
        %799 = vmatprep.subr.mxu0 0.0
        %800 = vmatpush1.msra.mxu0 0.0
        %801 = vmatprep.subr.mxu0 0.0
        %802 = vmatpush1.msra.mxu0 0.0
        %803 = vmatprep.subr.mxu0 0.0
        %804 = vmatpush1.msra.mxu0 0.0
        %805 = vmatprep.subr.mxu0 0.0
        %806 = vmatpush1.msra.mxu0 0.0
        %807 = vmatprep.subr.mxu0 0.0
        %808 = vmatpush1.msra.mxu0 0.0
        %809 = vmatprep.subr.mxu0 0.0
        %810 = vmatpush1.msra.mxu0 0.0
        %811 = vmatprep.subr.mxu0 0.0
        %812 = vmatpush1.msra.mxu0 0.0
        %813 = vmatprep.subr.mxu0 0.0
        %814 = vmatpush1.msra.mxu0 0.0
        %815 = vmatprep.subr.mxu0 %v788
        %816 = vmatpush1.msra.mxu0 %v785
        %817 = vmatprep.subr.mxu0 %v775
        %818 = vmatpush1.msra.mxu0 %v774
        %819 = vmatprep.subr.mxu0 %v772
        %820 = vmatpush1.msra.mxu0 %v771
        %821 = vmatprep.subr.mxu0 %v769
        %822 = vmatpush1.msra.mxu0 %v768
        %823 = vmatprep.subr.mxu0 %v766
        %824 = vmatpush1.msra.mxu0 %v765
        %825 = vmatprep.subr.mxu0 0.0
        %826 = vmatpush2.msra.mxu0 0.0
        %827 = vmatprep.subr.mxu0 0.0
        %828 = vmatpush2.msra.mxu0 0.0
        %829 = vmatprep.subr.mxu0 0.0
        %830 = vmatpush2.msra.mxu0 0.0
        %831 = vmatprep.subr.mxu0 0.0
        %832 = vmatpush2.msra.mxu0 0.0
        %833 = vmatprep.subr.mxu0 0.0
        %834 = vmatpush2.msra.mxu0 0.0
        %835 = vmatprep.subr.mxu0 0.0
        %836 = vmatpush2.msra.mxu0 0.0
        %837 = vmatprep.subr.mxu0 0.0
        %838 = vmatpush2.msra.mxu0 0.0
        %839 = vmatprep.subr.mxu0 0.0
        %840 = vmatpush2.msra.mxu0 0.0
        %841 = vmatprep.subr.mxu0 0.0
        %842 = vmatpush2.msra.mxu0 0.0
        %843 = vmatprep.subr.mxu0 0.0
        %844 = vmatpush2.msra.mxu0 0.0
        %845 = vmatprep.subr.mxu0 0.0
        %846 = vmatpush2.msra.mxu0 0.0
        %847 = vmatprep.subr.mxu0 0.0
        %848 = vmatpush2.msra.mxu0 0.0
        %849 = vmatprep.subr.mxu0 0.0
        %850 = vmatpush2.msra.mxu0 0.0
        %851 = vmatprep.subr.mxu0 0.0
        %852 = vmatpush2.msra.mxu0 0.0
        %853 = vmatprep.subr.mxu0 0.0
        %854 = vmatpush2.msra.mxu0 0.0
        %855 = vmatprep.subr.mxu0 0.0
        %856 = vmatpush2.msra.mxu0 0.0
        %857 = vmatprep.mubr.f32.mxu0 0.0
        %858 = vmatmul.mubr.f32.gmra.mxu0 %v782
        %v859 = vpop.f32.mrf.mxu0
        %v860 = vadd.f32 0.0, %v859
        %v861 = vpop.f32.mrf.mxu0
        %v862 = vadd.f32 0.0, %v861
        %863 = vdwg.mxu0
        %864 = vmatprep.subr.mxu0 0.0
        %865 = vmatpush1.msra.mxu0 0.0
        %866 = vmatprep.subr.mxu0 0.0
        %867 = vmatpush1.msra.mxu0 0.0
        %868 = vmatprep.subr.mxu0 0.0
        %869 = vmatpush1.msra.mxu0 0.0
        %870 = vmatprep.subr.mxu0 0.0
        %871 = vmatpush1.msra.mxu0 0.0
        %872 = vmatprep.subr.mxu0 0.0
        %873 = vmatpush1.msra.mxu0 0.0
        %874 = vmatprep.subr.mxu0 0.0
        %875 = vmatpush1.msra.mxu0 0.0
        %876 = vmatprep.subr.mxu0 0.0
        %877 = vmatpush1.msra.mxu0 0.0
        %878 = vmatprep.subr.mxu0 0.0
        %879 = vmatpush1.msra.mxu0 0.0
        %880 = vmatprep.subr.mxu0 0.0
        %881 = vmatpush1.msra.mxu0 0.0
        %882 = vmatprep.subr.mxu0 0.0
        %883 = vmatpush1.msra.mxu0 0.0
        %884 = vmatprep.subr.mxu0 0.0
        %885 = vmatpush1.msra.mxu0 0.0
        %886 = vmatprep.subr.mxu0 0.0
        %887 = vmatpush1.msra.mxu0 %v791
        %888 = vmatprep.subr.mxu0 0.0
        %889 = vmatpush1.msra.mxu0 %v776
        %890 = vmatprep.subr.mxu0 0.0
        %891 = vmatpush1.msra.mxu0 %v773
        %892 = vmatprep.subr.mxu0 0.0
        %893 = vmatpush1.msra.mxu0 %v770
        %894 = vmatprep.subr.mxu0 0.0
        %895 = vmatpush1.msra.mxu0 %v767
        %896 = vmatprep.subr.mxu0 0.0
        %897 = vmatpush2.msra.mxu0 0.0
        %898 = vmatprep.subr.mxu0 0.0
        %899 = vmatpush2.msra.mxu0 0.0
        %900 = vmatprep.subr.mxu0 0.0
        %901 = vmatpush2.msra.mxu0 0.0
        %902 = vmatprep.subr.mxu0 0.0
        %903 = vmatpush2.msra.mxu0 0.0
        %904 = vmatprep.subr.mxu0 0.0
        %905 = vmatpush2.msra.mxu0 0.0
        %906 = vmatprep.subr.mxu0 0.0
        %907 = vmatpush2.msra.mxu0 0.0
        %908 = vmatprep.subr.mxu0 0.0
        %909 = vmatpush2.msra.mxu0 0.0
        %910 = vmatprep.subr.mxu0 0.0
        %911 = vmatpush2.msra.mxu0 0.0
        %912 = vmatprep.subr.mxu0 0.0
        %913 = vmatpush2.msra.mxu0 0.0
        %914 = vmatprep.subr.mxu0 0.0
        %915 = vmatpush2.msra.mxu0 0.0
        %916 = vmatprep.subr.mxu0 0.0
        %917 = vmatpush2.msra.mxu0 0.0
        %918 = vmatprep.subr.mxu0 0.0
        %919 = vmatpush2.msra.mxu0 0.0
        %920 = vmatprep.subr.mxu0 0.0
        %921 = vmatpush2.msra.mxu0 0.0
        %922 = vmatprep.subr.mxu0 0.0
        %923 = vmatpush2.msra.mxu0 0.0
        %924 = vmatprep.subr.mxu0 0.0
        %925 = vmatpush2.msra.mxu0 0.0
        %926 = vmatprep.subr.mxu0 0.0
        %927 = vmatpush2.msra.mxu0 0.0
        %928 = vmatprep.mubr.f32.mxu0 0.0
        %929 = vmatmul.mubr.f32.gmra.mxu0 %v782
        %v930 = vpop.f32.mrf.mxu0
        %v931 = vadd.f32 0.0, %v930
        %v932 = vpop.f32.mrf.mxu0
        %933 = vdwg.mxu0
        %v934 = vmax.f32 %v860, 0.0
        %v935 = vmax.f32 %v862, 0.0
        %v936 = vmax.f32 %v931, 0.0
        %v937 = vmul.f32 %v934, %v656
        %v938 = vmul.f32 %v935, %v660
        %v939 = vmul.f32 %v936, %v664
        %940 = vst [vmem:[#allocation2] sm:$0xff] 0.0
        %vm941 = vcmask 863232
        %942 = vst.msk [vmem:[#allocation2 + $0x8] sm:$0xf] %vm941, 0.0
        %943 = vst [vmem:[#allocation3] sm:$0xff] 0.0
        %944 = vst.msk [vmem:[#allocation3 + $0x8] sm:$0xf] %vm941, 0.0
        %v948 = vcombine.low %v668, %v669
        %949 = vrot.lane.b32.xlu0 %v948, 19
        %v950 = vpop.permute.xlu0 %949
        %951 = vrot.lane.b32.xlu0 %v670, 19
        %v952 = vpop.permute.xlu0 %951
        %v953 = vrot.slane %v950, 4
        %vm954 = vcmask 154624
        %v955 = vsel %vm954, %v953, %v950
        %v956 = vsel %vm954, %v953, %v952
        %vm959 = vcmask 1043608
        %vm960 = vcmask 1047556
        %vm961 = vmor %vm960, %vm959
        %962 = vst.msk [vmem:[#allocation2] sm:$0xff] %vm961, %v955
        %vm963 = vcmask 707584
        %964 = vst.msk [vmem:[#allocation2 + $0x8] sm:$0xf] %vm963, %v956
        %v968 = vcombine.low %v937, %v938
        %969 = vrot.lane.b32.xlu0 %v968, 19
        %v970 = vpop.permute.xlu0 %969
        %971 = vrot.lane.b32.xlu0 %v939, 19
        %v972 = vpop.permute.xlu0 %971
        %v973 = vrot.slane %v970, 4
        %v974 = vsel %vm954, %v973, %v970
        %v975 = vsel %vm954, %v973, %v972
        %978 = vst.msk [vmem:[#allocation3] sm:$0xff] %vm961, %v974
        %979 = vst.msk [vmem:[#allocation3 + $0x8] sm:$0xf] %vm963, %v975
        %v980 = vld [vmem:[#allocation2] sm:$0xff]
        %v981 = vld [vmem:[#allocation2 + $0x8] sm:$0xf]
        %v982 = vld [vmem:[#allocation3] sm:$0xff]
        %v983 = vld [vmem:[#allocation3 + $0x8] sm:$0xf]
        %v986 = vcombine.high %v980, %v980
        %v988 = vcombine.low %v980, %v980
        %v989 = vcombine.low %v981, %v981
        %990 = vrot.lane.b32.xlu0 %v988, 127
        %v991 = vpop.permute.xlu0 %990
        %992 = vrot.lane.b32.xlu0 %v980, 127
        %v993 = vpop.permute.xlu0 %992
        %994 = vrot.lane.b32.xlu0 %v989, 127
        %v995 = vpop.permute.xlu0 %994
        %v996 = vsel %vm387, %v991, %v993
        %v997 = vsel %vm387, %v993, %v995
        %1001 = vrot.lane.b32.xlu0 %v980, 126
        %v1002 = vpop.permute.xlu0 %1001
        %1003 = vrot.lane.b32.xlu0 %v986, 126
        %v1004 = vpop.permute.xlu0 %1003
        %1005 = vrot.lane.b32.xlu0 %v981, 126
        %v1006 = vpop.permute.xlu0 %1005
        %v1007 = vsel %vm399, %v1002, %v1004
        %v1008 = vsel %vm399, %v1004, %v1006
        %1012 = vrot.lane.b32.xlu0 %v988, 110
        %v1013 = vpop.permute.xlu0 %1012
        %1014 = vrot.lane.b32.xlu0 %v980, 110
        %v1015 = vpop.permute.xlu0 %1014
        %1016 = vrot.lane.b32.xlu0 %v989, 110
        %v1017 = vpop.permute.xlu0 %1016
        %v1018 = vsel %vm411, %v1013, %v1015
        %v1019 = vsel %vm411, %v1015, %v1017
        %1023 = vrot.lane.b32.xlu0 %v980, 109
        %v1024 = vpop.permute.xlu0 %1023
        %1025 = vrot.lane.b32.xlu0 %v986, 109
        %v1026 = vpop.permute.xlu0 %1025
        %1027 = vrot.lane.b32.xlu0 %v981, 109
        %v1028 = vpop.permute.xlu0 %1027
        %v1029 = vsel %vm423, %v1024, %v1026
        %v1030 = vsel %vm423, %v1026, %v1028
        %1034 = vrot.lane.b32.xlu0 %v988, 108
        %v1035 = vpop.permute.xlu0 %1034
        %1036 = vrot.lane.b32.xlu0 %v980, 108
        %v1037 = vpop.permute.xlu0 %1036
        %1038 = vrot.lane.b32.xlu0 %v989, 108
        %v1039 = vpop.permute.xlu0 %1038
        %v1040 = vsel %vm435, %v1035, %v1037
        %v1041 = vsel %vm435, %v1037, %v1039
        %1045 = vrot.lane.b32.xlu0 %v980, 92
        %v1046 = vpop.permute.xlu0 %1045
        %1047 = vrot.lane.b32.xlu0 %v986, 92
        %v1048 = vpop.permute.xlu0 %1047
        %1049 = vrot.lane.b32.xlu0 %v981, 92
        %v1050 = vpop.permute.xlu0 %1049
        %v1051 = vsel %vm447, %v1046, %v1048
        %v1052 = vsel %vm447, %v1048, %v1050
        %1056 = vrot.lane.b32.xlu0 %v988, 91
        %v1057 = vpop.permute.xlu0 %1056
        %1058 = vrot.lane.b32.xlu0 %v980, 91
        %v1059 = vpop.permute.xlu0 %1058
        %1060 = vrot.lane.b32.xlu0 %v989, 91
        %v1061 = vpop.permute.xlu0 %1060
        %v1062 = vsel %vm459, %v1057, %v1059
        %v1063 = vsel %vm459, %v1059, %v1061
        %1067 = vrot.lane.b32.xlu0 %v980, 90
        %v1068 = vpop.permute.xlu0 %1067
        %1069 = vrot.lane.b32.xlu0 %v986, 90
        %v1070 = vpop.permute.xlu0 %1069
        %1071 = vrot.lane.b32.xlu0 %v981, 90
        %v1072 = vpop.permute.xlu0 %1071
        %v1073 = vsel %vm471, %v1068, %v1070
        %v1074 = vsel %vm471, %v1070, %v1072
        %v1080 = vcombine.low %v982, %v982
        %v1081 = vcombine.low %v983, %v983
        %v1084 = vcombine.high %v982, %v982
        %1085 = vrot.lane.b32.xlu0 %v982, 127
        %v1086 = vpop.permute.xlu0 %1085
        %1087 = vrot.lane.b32.xlu0 %v1084, 127
        %v1088 = vpop.permute.xlu0 %1087
        %1089 = vrot.lane.b32.xlu0 %v983, 127
        %v1090 = vpop.permute.xlu0 %1089
        %v1091 = vsel %vm387, %v1086, %v1088
        %v1092 = vsel %vm387, %v1088, %v1090
        %1096 = vrot.lane.b32.xlu0 %v1080, 126
        %v1097 = vpop.permute.xlu0 %1096
        %1098 = vrot.lane.b32.xlu0 %v982, 126
        %v1099 = vpop.permute.xlu0 %1098
        %1100 = vrot.lane.b32.xlu0 %v1081, 126
        %v1101 = vpop.permute.xlu0 %1100
        %v1102 = vsel %vm399, %v1097, %v1099
        %v1103 = vsel %vm399, %v1099, %v1101
        %1107 = vrot.lane.b32.xlu0 %v982, 110
        %v1108 = vpop.permute.xlu0 %1107
        %1109 = vrot.lane.b32.xlu0 %v1084, 110
        %v1110 = vpop.permute.xlu0 %1109
        %1111 = vrot.lane.b32.xlu0 %v983, 110
        %v1112 = vpop.permute.xlu0 %1111
        %v1113 = vsel %vm411, %v1108, %v1110
        %v1114 = vsel %vm411, %v1110, %v1112
        %1118 = vrot.lane.b32.xlu0 %v1080, 109
        %v1119 = vpop.permute.xlu0 %1118
        %1120 = vrot.lane.b32.xlu0 %v982, 109
        %v1121 = vpop.permute.xlu0 %1120
        %1122 = vrot.lane.b32.xlu0 %v1081, 109
        %v1123 = vpop.permute.xlu0 %1122
        %v1124 = vsel %vm423, %v1119, %v1121
        %v1125 = vsel %vm423, %v1121, %v1123
        %1129 = vrot.lane.b32.xlu0 %v982, 108
        %v1130 = vpop.permute.xlu0 %1129
        %1131 = vrot.lane.b32.xlu0 %v1084, 108
        %v1132 = vpop.permute.xlu0 %1131
        %1133 = vrot.lane.b32.xlu0 %v983, 108
        %v1134 = vpop.permute.xlu0 %1133
        %v1135 = vsel %vm435, %v1130, %v1132
        %v1136 = vsel %vm435, %v1132, %v1134
        %1140 = vrot.lane.b32.xlu0 %v1080, 92
        %v1141 = vpop.permute.xlu0 %1140
        %1142 = vrot.lane.b32.xlu0 %v982, 92
        %v1143 = vpop.permute.xlu0 %1142
        %1144 = vrot.lane.b32.xlu0 %v1081, 92
        %v1145 = vpop.permute.xlu0 %1144
        %v1146 = vsel %vm447, %v1141, %v1143
        %v1147 = vsel %vm447, %v1143, %v1145
        %v1151 = vsel %vm477, %v980, %v996
        %v1152 = vsel %vm477, %v986, %v997
        %v1153 = vsel %vm477, %v981, %v995
        %v1154 = vsel %vm477, %v1007, %v1018
        %v1155 = vsel %vm477, %v1008, %v1019
        %v1156 = vsel %vm477, %v1006, %v1017
        %v1157 = vsel %vm477, %v1029, %v1040
        %v1158 = vsel %vm477, %v1030, %v1041
        %v1159 = vsel %vm477, %v1028, %v1039
        %v1160 = vsel %vm477, %v1051, %v1062
        %v1161 = vsel %vm477, %v1052, %v1063
        %v1162 = vsel %vm477, %v1050, %v1061
        %v1163 = vsel %vm477, %v1073, %v1080
        %v1164 = vsel %vm477, %v1074, %v982
        %v1165 = vsel %vm477, %v1072, %v1081
        %v1166 = vsel %vm477, %v1091, %v1102
        %v1167 = vsel %vm477, %v1092, %v1103
        %v1168 = vsel %vm477, %v1090, %v1101
        %v1169 = vsel %vm477, %v1113, %v1124
        %v1170 = vsel %vm477, %v1114, %v1125
        %v1171 = vsel %vm477, %v1112, %v1123
        %v1172 = vsel %vm477, %v1135, %v1146
        %v1173 = vsel %vm477, %v1136, %v1147
        %v1174 = vsel %vm477, %v1134, %v1145
        %1176 = vrot.lane.b32.xlu0 %v1080, 127
        %v1177 = vpop.permute.xlu0 %1176
        %1178 = vrot.lane.b32.xlu0 %v1081, 127
        %v1179 = vpop.permute.xlu0 %1178
        %v1180 = vsel %vm387, %v1177, %v1086
        %v1181 = vsel %vm387, %v1086, %v1179
        %v1185 = vsel %vm477, %v982, %v1180
        %v1186 = vsel %vm477, %v1084, %v1181
        %v1187 = vsel %vm477, %v983, %v1179
        %1192 = vrot.lane.b32.xlu0 %v1185, 91
        %v1193 = vpop.permute.xlu0 %1192
        %1194 = vrot.lane.b32.xlu0 %v1186, 91
        %v1195 = vpop.permute.xlu0 %1194
        %1196 = vrot.lane.b32.xlu0 %v1187, 91
        %v1197 = vpop.permute.xlu0 %1196
        %1198 = vrot.lane.b32.xlu0 1.0, 91
        %v1199 = vpop.permute.xlu0 %1198
        %v1200 = vsel %vm459, %v1193, %v1195
        %v1201 = vsel %vm459, %v1195, %v1197
        %v1205 = vld [vmem:[#allocation10] sm:$0xff]
        %vm1206 = vcmask 596992
        %v1208 = vsel %vm1206, %v1205, 0
        %vm1210 = vcmask 1040384
        %v1211 = vsel %vm1210, %v1199, 0
        %1213 = vmatprep.subr.mxu0 0.0
        %1214 = vmatpush1.msra.mxu0 0.0
        %1215 = vmatprep.subr.mxu0 0.0
        %1216 = vmatpush1.msra.mxu0 0.0
        %1217 = vmatprep.subr.mxu0 0.0
        %1218 = vmatpush1.msra.mxu0 0.0
        %1219 = vmatprep.subr.mxu0 0.0
        %1220 = vmatpush1.msra.mxu0 0.0
        %1221 = vmatprep.subr.mxu0 0.0
        %1222 = vmatpush1.msra.mxu0 0.0
        %1223 = vmatprep.subr.mxu0 0.0
        %1224 = vmatpush1.msra.mxu0 0.0
        %1225 = vmatprep.subr.mxu0 %v1211
        %1226 = vmatpush1.msra.mxu0 %v1211
        %1227 = vmatprep.subr.mxu0 %v1201
        %1228 = vmatpush1.msra.mxu0 %v1200
        %1229 = vmatprep.subr.mxu0 %v1173
        %1230 = vmatpush1.msra.mxu0 %v1172
        %1231 = vmatprep.subr.mxu0 %v1170
        %1232 = vmatpush1.msra.mxu0 %v1169
        %1233 = vmatprep.subr.mxu0 %v1167
        %1234 = vmatpush1.msra.mxu0 %v1166
        %1235 = vmatprep.subr.mxu0 %v1164
        %1236 = vmatpush1.msra.mxu0 %v1163
        %1237 = vmatprep.subr.mxu0 %v1161
        %1238 = vmatpush1.msra.mxu0 %v1160
        %1239 = vmatprep.subr.mxu0 %v1158
        %1240 = vmatpush1.msra.mxu0 %v1157
        %1241 = vmatprep.subr.mxu0 %v1155
        %1242 = vmatpush1.msra.mxu0 %v1154
        %1243 = vmatprep.subr.mxu0 %v1152
        %1244 = vmatpush1.msra.mxu0 %v1151
        %1245 = vmatprep.subr.mxu0 0.0
        %1246 = vmatpush2.msra.mxu0 0.0
        %1247 = vmatprep.subr.mxu0 0.0
        %1248 = vmatpush2.msra.mxu0 0.0
        %1249 = vmatprep.subr.mxu0 0.0
        %1250 = vmatpush2.msra.mxu0 0.0
        %1251 = vmatprep.subr.mxu0 0.0
        %1252 = vmatpush2.msra.mxu0 0.0
        %1253 = vmatprep.subr.mxu0 0.0
        %1254 = vmatpush2.msra.mxu0 0.0
        %1255 = vmatprep.subr.mxu0 0.0
        %1256 = vmatpush2.msra.mxu0 0.0
        %1257 = vmatprep.subr.mxu0 0.0
        %1258 = vmatpush2.msra.mxu0 0.0
        %1259 = vmatprep.subr.mxu0 0.0
        %1260 = vmatpush2.msra.mxu0 0.0
        %1261 = vmatprep.subr.mxu0 0.0
        %1262 = vmatpush2.msra.mxu0 0.0
        %1263 = vmatprep.subr.mxu0 0.0
        %1264 = vmatpush2.msra.mxu0 0.0
        %1265 = vmatprep.subr.mxu0 0.0
        %1266 = vmatpush2.msra.mxu0 0.0
        %1267 = vmatprep.subr.mxu0 0.0
        %1268 = vmatpush2.msra.mxu0 0.0
        %1269 = vmatprep.subr.mxu0 0.0
        %1270 = vmatpush2.msra.mxu0 0.0
        %1271 = vmatprep.subr.mxu0 0.0
        %1272 = vmatpush2.msra.mxu0 0.0
        %1273 = vmatprep.subr.mxu0 0.0
        %1274 = vmatpush2.msra.mxu0 0.0
        %1275 = vmatprep.subr.mxu0 0.0
        %1276 = vmatpush2.msra.mxu0 0.0
        %1277 = vmatprep.mubr.f32.mxu0 0.0
        %1278 = vmatmul.mubr.f32.gmra.mxu0 %v1208
        %v1279 = vpop.f32.mrf.mxu0
        %v1280 = vadd.f32 0.0, %v1279
        %v1281 = vpop.f32.mrf.mxu0
        %v1282 = vadd.f32 0.0, %v1281
        %1283 = vdwg.mxu0
        %1284 = vmatprep.subr.mxu0 0.0
        %1285 = vmatpush1.msra.mxu0 0.0
        %1286 = vmatprep.subr.mxu0 0.0
        %1287 = vmatpush1.msra.mxu0 0.0
        %1288 = vmatprep.subr.mxu0 0.0
        %1289 = vmatpush1.msra.mxu0 0.0
        %1290 = vmatprep.subr.mxu0 0.0
        %1291 = vmatpush1.msra.mxu0 0.0
        %1292 = vmatprep.subr.mxu0 0.0
        %1293 = vmatpush1.msra.mxu0 0.0
        %1294 = vmatprep.subr.mxu0 0.0
        %1295 = vmatpush1.msra.mxu0 0.0
        %1296 = vmatprep.subr.mxu0 0.0
        %1297 = vmatpush1.msra.mxu0 %v1211
        %1298 = vmatprep.subr.mxu0 0.0
        %1299 = vmatpush1.msra.mxu0 %v1197
        %1300 = vmatprep.subr.mxu0 0.0
        %1301 = vmatpush1.msra.mxu0 %v1174
        %1302 = vmatprep.subr.mxu0 0.0
        %1303 = vmatpush1.msra.mxu0 %v1171
        %1304 = vmatprep.subr.mxu0 0.0
        %1305 = vmatpush1.msra.mxu0 %v1168
        %1306 = vmatprep.subr.mxu0 0.0
        %1307 = vmatpush1.msra.mxu0 %v1165
        %1308 = vmatprep.subr.mxu0 0.0
        %1309 = vmatpush1.msra.mxu0 %v1162
        %1310 = vmatprep.subr.mxu0 0.0
        %1311 = vmatpush1.msra.mxu0 %v1159
        %1312 = vmatprep.subr.mxu0 0.0
        %1313 = vmatpush1.msra.mxu0 %v1156
        %1314 = vmatprep.subr.mxu0 0.0
        %1315 = vmatpush1.msra.mxu0 %v1153
        %1316 = vmatprep.subr.mxu0 0.0
        %1317 = vmatpush2.msra.mxu0 0.0
        %1318 = vmatprep.subr.mxu0 0.0
        %1319 = vmatpush2.msra.mxu0 0.0
        %1320 = vmatprep.subr.mxu0 0.0
        %1321 = vmatpush2.msra.mxu0 0.0
        %1322 = vmatprep.subr.mxu0 0.0
        %1323 = vmatpush2.msra.mxu0 0.0
        %1324 = vmatprep.subr.mxu0 0.0
        %1325 = vmatpush2.msra.mxu0 0.0
        %1326 = vmatprep.subr.mxu0 0.0
        %1327 = vmatpush2.msra.mxu0 0.0
        %1328 = vmatprep.subr.mxu0 0.0
        %1329 = vmatpush2.msra.mxu0 0.0
        %1330 = vmatprep.subr.mxu0 0.0
        %1331 = vmatpush2.msra.mxu0 0.0
        %1332 = vmatprep.subr.mxu0 0.0
        %1333 = vmatpush2.msra.mxu0 0.0
        %1334 = vmatprep.subr.mxu0 0.0
        %1335 = vmatpush2.msra.mxu0 0.0
        %1336 = vmatprep.subr.mxu0 0.0
        %1337 = vmatpush2.msra.mxu0 0.0
        %1338 = vmatprep.subr.mxu0 0.0
        %1339 = vmatpush2.msra.mxu0 0.0
        %1340 = vmatprep.subr.mxu0 0.0
        %1341 = vmatpush2.msra.mxu0 0.0
        %1342 = vmatprep.subr.mxu0 0.0
        %1343 = vmatpush2.msra.mxu0 0.0
        %1344 = vmatprep.subr.mxu0 0.0
        %1345 = vmatpush2.msra.mxu0 0.0
        %1346 = vmatprep.subr.mxu0 0.0
        %1347 = vmatpush2.msra.mxu0 0.0
        %1348 = vmatprep.mubr.f32.mxu0 0.0
        %1349 = vmatmul.mubr.f32.gmra.mxu0 %v1208
        %v1350 = vpop.f32.mrf.mxu0
        %v1351 = vadd.f32 0.0, %v1350
        %v1352 = vpop.f32.mrf.mxu0
        %1353 = vdwg.mxu0
        %v1354 = vmax.f32 %v1280, 0.0
        %v1355 = vmax.f32 %v1282, 0.0
        %v1356 = vmax.f32 %v1351, 0.0
        %v1357 = vld [vmem:[%s5] sm:$0xf]
        %vm1358 = vcmask 72704
        %v1360 = vsel %vm1358, %v1357, 0
        %v1362 = vsel %vm1210, 1.0, 0
        %1364 = vmatprep.subr.mxu0 0.0
        %1365 = vmatpush1.msra.mxu0 0.0
        %1366 = vmatprep.subr.mxu0 0.0
        %1367 = vmatpush1.msra.mxu0 0.0
        %1368 = vmatprep.subr.mxu0 0.0
        %1369 = vmatpush1.msra.mxu0 0.0
        %1370 = vmatprep.subr.mxu0 0.0
        %1371 = vmatpush1.msra.mxu0 0.0
        %1372 = vmatprep.subr.mxu0 0.0
        %1373 = vmatpush1.msra.mxu0 0.0
        %1374 = vmatprep.subr.mxu0 0.0
        %1375 = vmatpush1.msra.mxu0 0.0
        %1376 = vmatprep.subr.mxu0 0.0
        %1377 = vmatpush1.msra.mxu0 0.0
        %1378 = vmatprep.subr.mxu0 0.0
        %1379 = vmatpush1.msra.mxu0 0.0
        %1380 = vmatprep.subr.mxu0 0.0
        %1381 = vmatpush1.msra.mxu0 0.0
        %1382 = vmatprep.subr.mxu0 0.0
        %1383 = vmatpush1.msra.mxu0 0.0
        %1384 = vmatprep.subr.mxu0 0.0
        %1385 = vmatpush1.msra.mxu0 0.0
        %1386 = vmatprep.subr.mxu0 0.0
        %1387 = vmatpush1.msra.mxu0 0.0
        %1388 = vmatprep.subr.mxu0 0.0
        %1389 = vmatpush1.msra.mxu0 0.0
        %1390 = vmatprep.subr.mxu0 0.0
        %1391 = vmatpush1.msra.mxu0 0.0
        %1392 = vmatprep.subr.mxu0 %v1362
        %1393 = vmatpush1.msra.mxu0 %v1362
        %1394 = vmatprep.subr.mxu0 %v1355
        %1395 = vmatpush1.msra.mxu0 %v1354
        %1396 = vmatprep.subr.mxu0 0.0
        %1397 = vmatpush2.msra.mxu0 0.0
        %1398 = vmatprep.subr.mxu0 0.0
        %1399 = vmatpush2.msra.mxu0 0.0
        %1400 = vmatprep.subr.mxu0 0.0
        %1401 = vmatpush2.msra.mxu0 0.0
        %1402 = vmatprep.subr.mxu0 0.0
        %1403 = vmatpush2.msra.mxu0 0.0
        %1404 = vmatprep.subr.mxu0 0.0
        %1405 = vmatpush2.msra.mxu0 0.0
        %1406 = vmatprep.subr.mxu0 0.0
        %1407 = vmatpush2.msra.mxu0 0.0
        %1408 = vmatprep.subr.mxu0 0.0
        %1409 = vmatpush2.msra.mxu0 0.0
        %1410 = vmatprep.subr.mxu0 0.0
        %1411 = vmatpush2.msra.mxu0 0.0
        %1412 = vmatprep.subr.mxu0 0.0
        %1413 = vmatpush2.msra.mxu0 0.0
        %1414 = vmatprep.subr.mxu0 0.0
        %1415 = vmatpush2.msra.mxu0 0.0
        %1416 = vmatprep.subr.mxu0 0.0
        %1417 = vmatpush2.msra.mxu0 0.0
        %1418 = vmatprep.subr.mxu0 0.0
        %1419 = vmatpush2.msra.mxu0 0.0
        %1420 = vmatprep.subr.mxu0 0.0
        %1421 = vmatpush2.msra.mxu0 0.0
        %1422 = vmatprep.subr.mxu0 0.0
        %1423 = vmatpush2.msra.mxu0 0.0
        %1424 = vmatprep.subr.mxu0 0.0
        %1425 = vmatpush2.msra.mxu0 0.0
        %1426 = vmatprep.subr.mxu0 0.0
        %1427 = vmatpush2.msra.mxu0 0.0
        %1428 = vmatprep.mubr.f32.mxu0 0.0
        %1429 = vmatmul.mubr.f32.gmra.mxu0 %v1360
        %v1430 = vpop.f32.mrf.mxu0
        %v1431 = vadd.f32 0.0, %v1430
        %v1432 = vpop.f32.mrf.mxu0
        %v1433 = vadd.f32 0.0, %v1432
        %1434 = vdwg.mxu0
        %1435 = vmatprep.subr.mxu0 0.0
        %1436 = vmatpush1.msra.mxu0 0.0
        %1437 = vmatprep.subr.mxu0 0.0
        %1438 = vmatpush1.msra.mxu0 0.0
        %1439 = vmatprep.subr.mxu0 0.0
        %1440 = vmatpush1.msra.mxu0 0.0
        %1441 = vmatprep.subr.mxu0 0.0
        %1442 = vmatpush1.msra.mxu0 0.0
        %1443 = vmatprep.subr.mxu0 0.0
        %1444 = vmatpush1.msra.mxu0 0.0
        %1445 = vmatprep.subr.mxu0 0.0
        %1446 = vmatpush1.msra.mxu0 0.0
        %1447 = vmatprep.subr.mxu0 0.0
        %1448 = vmatpush1.msra.mxu0 0.0
        %1449 = vmatprep.subr.mxu0 0.0
        %1450 = vmatpush1.msra.mxu0 0.0
        %1451 = vmatprep.subr.mxu0 0.0
        %1452 = vmatpush1.msra.mxu0 0.0
        %1453 = vmatprep.subr.mxu0 0.0
        %1454 = vmatpush1.msra.mxu0 0.0
        %1455 = vmatprep.subr.mxu0 0.0
        %1456 = vmatpush1.msra.mxu0 0.0
        %1457 = vmatprep.subr.mxu0 0.0
        %1458 = vmatpush1.msra.mxu0 0.0
        %1459 = vmatprep.subr.mxu0 0.0
        %1460 = vmatpush1.msra.mxu0 0.0
        %1461 = vmatprep.subr.mxu0 0.0
        %1462 = vmatpush1.msra.mxu0 0.0
        %1463 = vmatprep.subr.mxu0 0.0
        %1464 = vmatpush1.msra.mxu0 %v1362
        %1465 = vmatprep.subr.mxu0 0.0
        %1466 = vmatpush1.msra.mxu0 %v1356
        %1467 = vmatprep.subr.mxu0 0.0
        %1468 = vmatpush2.msra.mxu0 0.0
        %1469 = vmatprep.subr.mxu0 0.0
        %1470 = vmatpush2.msra.mxu0 0.0
        %1471 = vmatprep.subr.mxu0 0.0
        %1472 = vmatpush2.msra.mxu0 0.0
        %1473 = vmatprep.subr.mxu0 0.0
        %1474 = vmatpush2.msra.mxu0 0.0
        %1475 = vmatprep.subr.mxu0 0.0
        %1476 = vmatpush2.msra.mxu0 0.0
        %1477 = vmatprep.subr.mxu0 0.0
        %1478 = vmatpush2.msra.mxu0 0.0
        %1479 = vmatprep.subr.mxu0 0.0
        %1480 = vmatpush2.msra.mxu0 0.0
        %1481 = vmatprep.subr.mxu0 0.0
        %1482 = vmatpush2.msra.mxu0 0.0
        %1483 = vmatprep.subr.mxu0 0.0
        %1484 = vmatpush2.msra.mxu0 0.0
        %1485 = vmatprep.subr.mxu0 0.0
        %1486 = vmatpush2.msra.mxu0 0.0
        %1487 = vmatprep.subr.mxu0 0.0
        %1488 = vmatpush2.msra.mxu0 0.0
        %1489 = vmatprep.subr.mxu0 0.0
        %1490 = vmatpush2.msra.mxu0 0.0
        %1491 = vmatprep.subr.mxu0 0.0
        %1492 = vmatpush2.msra.mxu0 0.0
        %1493 = vmatprep.subr.mxu0 0.0
        %1494 = vmatpush2.msra.mxu0 0.0
        %1495 = vmatprep.subr.mxu0 0.0
        %1496 = vmatpush2.msra.mxu0 0.0
        %1497 = vmatprep.subr.mxu0 0.0
        %1498 = vmatpush2.msra.mxu0 0.0
        %1499 = vmatprep.mubr.f32.mxu0 0.0
        %1500 = vmatmul.mubr.f32.gmra.mxu0 %v1360
        %v1501 = vpop.f32.mrf.mxu0
        %v1502 = vadd.f32 0.0, %v1501
        %v1503 = vpop.f32.mrf.mxu0
        %1504 = vdwg.mxu0
        %v1505 = vmax.f32 %v1431, 0.0
        %v1506 = vmax.f32 %v1433, 0.0
        %v1507 = vmax.f32 %v1502, 0.0
        %v1510 = vcombine.low %v1505, %v1506
        %1512 = vst [vmem:[%s369] sm:$0xff] %v1510
        %vm1513 = vcmask 551936
        %1514 = vst.msk [vmem:[%s369 + $0x8] sm:$0xf] %vm1513, %v1507
        %s1515 = sand.u32 %s193, 1
        %s1516 = scalar_lea.sflag [#allocation6], %s1515
        %s1517 = sand.u32 %s193, 1
        %s1518 = smul.addr %s1517, 12
        %s1519 = scalar_lea.vmem [#allocation13], %s1518
        // Predicated region
        $region69: #{tpu_custom_call.1} parent=47 // pred_check
          %p1520 = pneg %p203
        $region70: #{tpu_custom_call.1} parent=47 // pred_check_branch
          %1522 = sbr.rel (%p1520) target = $region72
        $region71: #{tpu_custom_call.1} parent=47 // pred_region
          %s1524 = ssub.s32 192, 192
          %1525 = vsyncadd %s1516, %s1524
          %s1526 = smul.addr %s28, 3
          %s1527 = smul.addr %s1526, 64
          %s1528 = scalar_lea.hbm %s7, %s1527
          %s1530 = sshll.u32 %s1519, 4
          %s1531 = int_to_ptr.vmem [resolvable:$true] %s1530
          %1533 = dma.vmem_to_hbm [thread:$0]  %s1531, 192, %s1528, %s1516
        $region72: #{tpu_custom_call.1} parent=47 // pred_fallthru
          _
      $region48: #{tpu_custom_call.1} parent=5 // pred_fallthru
        _
      %p1534 = scmp.le.s32.totalorder 2, %s23
      // Predicated region
      $region73: #{tpu_custom_call.1} parent=5 // pred_check
        %p1535 = pneg %p1534
      $region74: #{tpu_custom_call.1} parent=5 // pred_check_branch
        %1537 = sbr.rel (%p1535) target = $region76
      $region75: #{tpu_custom_call.1} parent=5 // pred_region
        %s1538 = ssub.s32 %s23, 2
        // Predicated region
        $region77: #{tpu_custom_call.1} parent=75 // pred_check
          %p1539 = pneg %p209
        $region78: #{tpu_custom_call.1} parent=75 // pred_check_branch
          %1541 = sbr.rel (%p1539) target = $region80
        $region79: #{tpu_custom_call.1} parent=75 // pred_region
          %s1542 = sand.u32 %s194, 1
          %s1543 = scalar_lea.sflag [#allocation6], %s1542
          %s1544 = sand.u32 %s194, 1
          %s1545 = smul.addr %s1544, 12
          %s1546 = scalar_lea.vmem [#allocation13], %s1545
          %1547 = dma.done %s1543, 192
        $region80: #{tpu_custom_call.1} parent=75 // pred_fallthru
          _
      $region76: #{tpu_custom_call.1} parent=5 // pred_fallthru
        _
    $region6: #{tpu_custom_call.1} parent=1 // loop_footer
      %s27 = sadd.s32 1, %s23
    $region7: #{tpu_custom_call.1} parent=1 // loop_footer_branch
      %22 = sbr.rel target = $region3
    $region8: #{tpu_custom_call.1} parent=1 // loop_exit
      _
    %1548 = vsyncpa [#allocation5], 1
    %s1549 = scalar_lea.sflag [#allocation5], 1
    %1550 = vsyncpa %s1549, 1
    %1551 = vsyncpa [#allocation8], 1
    %s1552 = scalar_lea.sflag [#allocation8], 1
    %1553 = vsyncpa %s1552, 1
    %1554 = vsyncpa [#allocation11], 1
    %1555 = vsyncpa [#allocation6], 1
    %s1556 = scalar_lea.sflag [#allocation6], 1
    %1557 = vsyncpa %s1556, 1

</llo_original>
